<compile_context>
chip_gen: v6e
topology: v6e:2x2x1
jax: 0.10.0
libtpu: 0.0.40
codegen_flags: <defaults>
</compile_context>

<pallas_src>
import functools

import jax
import jax.numpy as jnp
import numpy as np
from jax import lax
from jax.experimental import pallas as pl
from jax.experimental.pallas import tpu as pltpu


# -----------------------------------------------------------------------------
# Fused kernel: one image per grid step.  All tensors channels-first:
#   x_ref   : (1, C, H*W)  f32    input block (lane-dense)
#   wc1_ref : (C, 9C)      bf16   conv1 weights, col index = (kh*3+kw)*C + cin
#   bc1_ref : (C, 1)       f32
#   wc2_ref : (C, 9C)      bf16   conv2 weights
#   bc2_ref : (C, 1)       f32
#   w1_ref  : (C, Cr)      f32    CA squeeze weights (1/(H*W) folded in)
#   b1_ref  : (1, Cr)      f32
#   w2t_ref : (C, Cr)      f32    CA excite weights (transposed)
#   b2_ref  : (C, 1)       f32
#   o_ref   : (1, C, H*W)  f32
#   s_ref   : VMEM (C, lead + H*W + lead) bf16 flat zero-haloed activation scratch
# -----------------------------------------------------------------------------
def _res_attn_kernel(x_ref, wc1_ref, bc1_ref, wc2_ref, bc2_ref,
                     w1_ref, b1_ref, w2t_ref, b2_ref,
                     o_ref, s_ref, *, H, W, lead, res_scale):
    C = o_ref.shape[1]
    HW = H * W
    LP = s_ref.shape[1]

    # Lane masks fixing the row wrap-around of the flat-spatial shift trick:
    # kw=0 taps must not see col W-1 of the previous row (kill w == 0), kw=2 taps
    # must not see col 0 of the next row (kill w == W-1).
    col = lax.broadcasted_iota(jnp.int32, (1, HW), 1) % W
    keep_kw0 = col != 0
    keep_kw2 = col != (W - 1)

    def conv3x3(wc_ref, bc_ref):
        xp = s_ref[...]                                        # (C, LP) bf16
        taps = []
        for kh in range(3):
            for kw in range(3):
                off = lead + (kh - 1) * W + (kw - 1)           # static offset
                t = xp[:, off:off + HW]                        # (C, HW) bf16
                if kw == 0:
                    t = jnp.where(keep_kw0, t, jnp.zeros_like(t))
                elif kw == 2:
                    t = jnp.where(keep_kw2, t, jnp.zeros_like(t))
                taps.append(t)
        # (9C, HW): taps stacked along sublanes at multiples of C (aligned placement).
        cols_t = jnp.concatenate(taps, axis=0)
        acc = jnp.dot(wc_ref[...], cols_t,                     # bf16 x bf16 -> f32 MXU
                      preferred_element_type=jnp.float32)
        return acc + bc_ref[...]                               # (C, HW) f32

    # Zero ONLY the left/right halo strips (128-lane aligned stores), every step.
    s_ref[:, 0:lead] = jnp.zeros((C, lead), jnp.bfloat16)
    s_ref[:, lead + HW:LP] = jnp.zeros((C, LP - lead - HW), jnp.bfloat16)

    # conv1 + ReLU
    s_ref[:, lead:lead + HW] = x_ref[0].astype(jnp.bfloat16)
    h = jnp.maximum(conv3x3(wc1_ref, bc1_ref), 0.0)            # (C, HW) f32

    # conv2 (halo strips are still zero)
    s_ref[:, lead:lead + HW] = h.astype(jnp.bfloat16)
    r = conv3x3(wc2_ref, bc2_ref)                              # (C, HW) f32

    # Channel attention on VPU/XLU (kept off the MXU on this tiny serial chain).
    pooled = jnp.sum(r, axis=1, keepdims=True)                 # (C, 1)  sum-pool
    z = jnp.sum(pooled * w1_ref[...], axis=0, keepdims=True)   # (1, Cr) squeeze
    z = jnp.maximum(z + b1_ref[...], 0.0)                      # ReLU
    y = jnp.sum(w2t_ref[...] * z, axis=1, keepdims=True)       # (C, 1)  excite
    y = jax.nn.sigmoid(y + b2_ref[...]) * res_scale            # fold res_scale in

    out = x_ref[0] + r * y                                     # residual (x re-read)
    o_ref[...] = out.reshape(1, C, HW).astype(o_ref.dtype)


def res_attention_block(x_nchw, params, res_scale=1.0):
    """x_nchw: (N, C, H, W) float32 (PyTorch layout).  Returns (N, C, H, W)."""
    N, C, H, W = x_nchw.shape
    HW = H * W
    Cr = params["w_du1"].shape[1]
    assert C % 8 == 0 and Cr >= 1

    # --- host-side weight plumbing (layout only) ---
    def conv_w(w_hwio):   # (3,3,Cin,Cout) -> (Cout, 9*Cin) bf16, tap order kh*3+kw
        return jnp.transpose(w_hwio, (3, 0, 1, 2)).reshape(C, 9 * C).astype(jnp.bfloat16)

    wc1 = conv_w(params["w_conv1"])
    wc2 = conv_w(params["w_conv2"])
    bc1 = params["b_conv1"].reshape(C, 1).astype(jnp.float32)
    bc2 = params["b_conv2"].reshape(C, 1).astype(jnp.float32)
    w1s = (params["w_du1"] / float(HW)).astype(jnp.float32)    # (C, Cr) avg-pool folded
    b1 = params["b_du1"].reshape(1, Cr).astype(jnp.float32)
    w2t = jnp.transpose(params["w_du2"]).astype(jnp.float32)   # (C, Cr)
    b2 = params["b_du2"].reshape(C, 1).astype(jnp.float32)

    # Flat scratch geometry: image at lane offset `lead` (multiple of 128), with
    # >= W+1 zero lanes on each side for the halo reads.
    lead = ((W + 1 + 127) // 128) * 128
    LP = lead + HW + lead

    x_flat = x_nchw.reshape(N, C, HW)     # NCHW -> (N, C, H*W): pure reshape

    kernel = functools.partial(_res_attn_kernel, H=H, W=W, lead=lead,
                               res_scale=float(res_scale))
    out = pl.pallas_call(
        kernel,
        out_shape=jax.ShapeDtypeStruct((N, C, HW), x_nchw.dtype),
        grid=(N,),
        in_specs=[
            pl.BlockSpec((1, C, HW), lambda n: (n, 0, 0)),     # x (lane-dense)
            pl.BlockSpec((C, 9 * C), lambda n: (0, 0)),        # conv1 W (bf16)
            pl.BlockSpec((C, 1), lambda n: (0, 0)),
            pl.BlockSpec((C, 9 * C), lambda n: (0, 0)),        # conv2 W (bf16)
            pl.BlockSpec((C, 1), lambda n: (0, 0)),
            pl.BlockSpec((C, Cr), lambda n: (0, 0)),           # CA squeeze
            pl.BlockSpec((1, Cr), lambda n: (0, 0)),
            pl.BlockSpec((C, Cr), lambda n: (0, 0)),           # CA excite (transposed)
            pl.BlockSpec((C, 1), lambda n: (0, 0)),
        ],
        out_specs=pl.BlockSpec((1, C, HW), lambda n: (n, 0, 0)),
        scratch_shapes=[pltpu.VMEM((C, LP), jnp.bfloat16)],
        compiler_params=pltpu.CompilerParams(
            dimension_semantics=("parallel",),   # v7x: batch sharded over both TCs
            vmem_limit_bytes=32 * 1024 * 1024),
    )(x_flat, wc1, bc1, wc2, bc2, w1s, b1, w2t, b2)
    return out.reshape(N, C, H, W)


# -----------------------------------------------------------------------------
# Pure-JAX f32 reference (matches the PyTorch module).
# -----------------------------------------------------------------------------
def res_attention_block_ref(x_nchw, params, res_scale=1.0):
    x = jnp.transpose(x_nchw, (0, 2, 3, 1))   # NHWC

    def conv(a, w, b):
        y = lax.conv_general_dilated(a, w, (1, 1), "SAME",
                                     dimension_numbers=("NHWC", "HWIO", "NHWC"))
        return y + b.reshape(1, 1, 1, -1)

    h = jax.nn.relu(conv(x, params["w_conv1"], params["b_conv1"]))
    r = conv(h, params["w_conv2"], params["b_conv2"])
    y = jnp.mean(r, axis=(1, 2), keepdims=True)
    y = jax.nn.relu(jnp.einsum("nhwc,cd->nhwd", y, params["w_du1"]) + params["b_du1"])
    y = jax.nn.sigmoid(jnp.einsum("nhwd,dc->nhwc", y, params["w_du2"]) + params["b_du2"])
    out = x + res_scale * (r * y)
    return jnp.transpose(out, (0, 3, 1, 2))


if __name__ == "__main__":
    # ResAttentionBlock(conv=default_conv, n_feats=32, kernel_size=3, bias=True)
    N, C, H, W = 2, 32, 16, 16
    reduction = 16
    Cr = C // reduction
    res_scale = 1.0

    key = jax.random.PRNGKey(0)
    ks = jax.random.split(key, 9)
    scale = 1.0 / np.sqrt(9 * C)

    params = {
        # conv weights stored HWIO: (KH, KW, Cin, Cout)
        "w_conv1": jax.random.normal(ks[0], (3, 3, C, C), jnp.float32) * scale,
        "b_conv1": jax.random.normal(ks[1], (C,), jnp.float32) * scale,
        "w_conv2": jax.random.normal(ks[2], (3, 3, C, C), jnp.float32) * scale,
        "b_conv2": jax.random.normal(ks[3], (C,), jnp.float32) * scale,
        # channel-attention 1x1 convs as dense (Cin, Cout)
        "w_du1": jax.random.normal(ks[4], (C, Cr), jnp.float32) * (1.0 / np.sqrt(C)),
        "b_du1": jax.random.normal(ks[5], (1, Cr), jnp.float32) * 0.1,
        "w_du2": jax.random.normal(ks[6], (Cr, C), jnp.float32) * (1.0 / np.sqrt(Cr)),
        "b_du2": jax.random.normal(ks[7], (1, C), jnp.float32) * 0.1,
    }

    x = jax.random.normal(ks[8], (N, C, H, W), jnp.float32)   # PyTorch NCHW layout

    out = jax.block_until_ready(res_attention_block(x, params, res_scale))
    ref = jax.block_until_ready(res_attention_block_ref(x, params, res_scale))

    assert out.shape == (N, C, H, W)
    max_err = float(jnp.max(jnp.abs(out - ref)))
    # bf16 MXU operands (f32 accumulation) -> relaxed tolerance vs the f32 reference;
    # layout / tap-ordering bugs would produce O(1) errors, far above this.
    assert jnp.allclose(out, ref, atol=5e-2, rtol=5e-2), f"mismatch vs ref (max err {max_err})"

    print("KERNEL_OK")
</pallas_src>

<mosaic_0001>
module attributes {stable_mosaic.version = 11 : i64} {
  func.func @_res_attn_kernel(%arg0: i32, %arg1: memref<1x32x256xf32, #tpu.memory_space<vmem>>, %arg2: memref<32x288xbf16, #tpu.memory_space<vmem>>, %arg3: memref<32x1xf32, #tpu.memory_space<vmem>>, %arg4: memref<32x288xbf16, #tpu.memory_space<vmem>>, %arg5: memref<32x1xf32, #tpu.memory_space<vmem>>, %arg6: memref<32x2xf32, #tpu.memory_space<vmem>>, %arg7: memref<1x2xf32, #tpu.memory_space<vmem>>, %arg8: memref<32x2xf32, #tpu.memory_space<vmem>>, %arg9: memref<32x1xf32, #tpu.memory_space<vmem>>, %arg10: memref<1x32x256xf32, #tpu.memory_space<vmem>>, %arg11: memref<32x512xbf16, #tpu.memory_space<vmem>>) attributes {dimension_semantics = [#tpu.dimension_semantics<parallel>], iteration_bounds = array<i64: 2>, scalar_prefetch = 0 : i64, scratch_operands = 1 : i64, tpu.core_type = #tpu.core_type<tc>, window_params = [{transform_indices = @transform_0, window_bounds = array<i64: 1, 32, 256>}, {pipeline_mode = #tpu.pipeline_mode<synchronous>, transform_indices = @transform_1, window_bounds = array<i64: 32, 288>}, {pipeline_mode = #tpu.pipeline_mode<synchronous>, transform_indices = @transform_2, window_bounds = array<i64: 32, 1>}, {pipeline_mode = #tpu.pipeline_mode<synchronous>, transform_indices = @transform_3, window_bounds = array<i64: 32, 288>}, {pipeline_mode = #tpu.pipeline_mode<synchronous>, transform_indices = @transform_4, window_bounds = array<i64: 32, 1>}, {pipeline_mode = #tpu.pipeline_mode<synchronous>, transform_indices = @transform_5, window_bounds = array<i64: 32, 2>}, {pipeline_mode = #tpu.pipeline_mode<synchronous>, transform_indices = @transform_6, window_bounds = array<i64: 1, 2>}, {pipeline_mode = #tpu.pipeline_mode<synchronous>, transform_indices = @transform_7, window_bounds = array<i64: 32, 2>}, {pipeline_mode = #tpu.pipeline_mode<synchronous>, transform_indices = @transform_8, window_bounds = array<i64: 32, 1>}, {transform_indices = @transform_9, window_bounds = array<i64: 1, 32, 256>}]} {
    %0 = tpu.iota {dimensions = array<i32: 1>} : vector<1x256xi32>
    %c16_i32 = arith.constant 16 : i32
    %c0_i32 = arith.constant 0 : i32
    %1 = arith.cmpi eq, %c16_i32, %c0_i32 : i32
    %c1_i32 = arith.constant 1 : i32
    %2 = arith.select %1, %c1_i32, %c16_i32 : i32
    %3 = vector.broadcast %2 : i32 to vector<1x256xi32>
    %4 = arith.remsi %0, %3 : vector<1x256xi32>
    %c0_i32_0 = arith.constant 0 : i32
    %5 = vector.broadcast %c0_i32_0 : i32 to vector<1x256xi32>
    %6 = arith.cmpi ne, %4, %5 : vector<1x256xi32>
    %c0_i32_1 = arith.constant 0 : i32
    %7 = vector.broadcast %c0_i32_1 : i32 to vector<1x256xi32>
    %8 = arith.cmpi slt, %4, %7 : vector<1x256xi32>
    %c0_i32_2 = arith.constant 0 : i32
    %9 = arith.cmpi slt, %2, %c0_i32_2 : i32
    %10 = vector.broadcast %9 : i1 to vector<1x256xi1>
    %11 = vector.broadcast %10 : vector<1x256xi1> to vector<1x256xi1>
    %12 = arith.xori %8, %11 : vector<1x256xi1>
    %13 = arith.andi %12, %6 : vector<1x256xi1>
    %14 = vector.broadcast %2 : i32 to vector<1x256xi32>
    %15 = arith.addi %4, %14 : vector<1x256xi32>
    %16 = arith.select %13, %15, %4 : vector<1x256xi1>, vector<1x256xi32>
    %c0_i32_3 = arith.constant 0 : i32
    %17 = vector.broadcast %c0_i32_3 : i32 to vector<1x256xi32>
    %18 = arith.cmpi ne, %16, %17 : vector<1x256xi32>
    %c15_i32 = arith.constant 15 : i32
    %19 = vector.broadcast %c15_i32 : i32 to vector<1x256xi32>
    %20 = arith.cmpi ne, %16, %19 : vector<1x256xi32>
    %cst = arith.constant 0.000000e+00 : bf16
    %21 = vector.broadcast %cst : bf16 to vector<32x128xbf16>
    %c0 = arith.constant 0 : index
    %c0_4 = arith.constant 0 : index
    %22 = vector.load %arg11[%c0, %c0_4] : memref<32x512xbf16, #tpu.memory_space<vmem>>, vector<32x128xbf16>
    tpu.vector_store %arg11[%c0, %c0_4], %21 {strides = array<i32>} : memref<32x512xbf16, #tpu.memory_space<vmem>>, vector<32x128xbf16>,
    %cst_5 = arith.constant 0.000000e+00 : bf16
    %23 = vector.broadcast %cst_5 : bf16 to vector<32x128xbf16>
    %c0_6 = arith.constant 0 : index
    %c384 = arith.constant 384 : index
    %24 = vector.load %arg11[%c0_6, %c384] : memref<32x512xbf16, #tpu.memory_space<vmem>>, vector<32x128xbf16>
    tpu.vector_store %arg11[%c0_6, %c384], %23 {strides = array<i32>} : memref<32x512xbf16, #tpu.memory_space<vmem>>, vector<32x128xbf16>,
    %c0_7 = arith.constant 0 : index
    %c0_8 = arith.constant 0 : index
    %c0_9 = arith.constant 0 : index
    %25 = vector.load %arg1[%c0_7, %c0_8, %c0_9] : memref<1x32x256xf32, #tpu.memory_space<vmem>>, vector<1x32x256xf32>
    %26 = vector.shape_cast %25 : vector<1x32x256xf32> to vector<32x256xf32>
    %27 = arith.truncf %26 : vector<32x256xf32> to vector<32x256xbf16>
    %c0_10 = arith.constant 0 : index
    %c128 = arith.constant 128 : index
    %28 = vector.load %arg11[%c0_10, %c128] : memref<32x512xbf16, #tpu.memory_space<vmem>>, vector<32x256xbf16>
    tpu.vector_store %arg11[%c0_10, %c128], %27 {strides = array<i32>} : memref<32x512xbf16, #tpu.memory_space<vmem>>, vector<32x256xbf16>,
    %c0_11 = arith.constant 0 : index
    %c0_12 = arith.constant 0 : index
    %29 = vector.load %arg11[%c0_11, %c0_12] : memref<32x512xbf16, #tpu.memory_space<vmem>>, vector<32x512xbf16>
    %30 = vector.extract_strided_slice %29 {offsets = [0, 111], sizes = [32, 256], strides = [1, 1]} : vector<32x512xbf16> to vector<32x256xbf16>
    %cst_13 = arith.constant 0.000000e+00 : bf16
    %31 = vector.broadcast %cst_13 : bf16 to vector<32x256xbf16>
    %32 = vector.shape_cast %18 : vector<1x256xi1> to vector<1x256xi1>
    %33 = vector.broadcast %32 : vector<1x256xi1> to vector<32x256xi1>
    %34 = arith.select %33, %30, %31 : vector<32x256xi1>, vector<32x256xbf16>
    %35 = vector.extract_strided_slice %29 {offsets = [0, 112], sizes = [32, 256], strides = [1, 1]} : vector<32x512xbf16> to vector<32x256xbf16>
    %36 = vector.extract_strided_slice %29 {offsets = [0, 113], sizes = [32, 256], strides = [1, 1]} : vector<32x512xbf16> to vector<32x256xbf16>
    %cst_14 = arith.constant 0.000000e+00 : bf16
    %37 = vector.broadcast %cst_14 : bf16 to vector<32x256xbf16>
    %38 = vector.shape_cast %20 : vector<1x256xi1> to vector<1x256xi1>
    %39 = vector.broadcast %38 : vector<1x256xi1> to vector<32x256xi1>
    %40 = arith.select %39, %36, %37 : vector<32x256xi1>, vector<32x256xbf16>
    %41 = vector.extract_strided_slice %29 {offsets = [0, 127], sizes = [32, 256], strides = [1, 1]} : vector<32x512xbf16> to vector<32x256xbf16>
    %cst_15 = arith.constant 0.000000e+00 : bf16
    %42 = vector.broadcast %cst_15 : bf16 to vector<32x256xbf16>
    %43 = vector.shape_cast %18 : vector<1x256xi1> to vector<1x256xi1>
    %44 = vector.broadcast %43 : vector<1x256xi1> to vector<32x256xi1>
    %45 = arith.select %44, %41, %42 : vector<32x256xi1>, vector<32x256xbf16>
    %46 = vector.extract_strided_slice %29 {offsets = [0, 128], sizes = [32, 256], strides = [1, 1]} : vector<32x512xbf16> to vector<32x256xbf16>
    %47 = vector.extract_strided_slice %29 {offsets = [0, 129], sizes = [32, 256], strides = [1, 1]} : vector<32x512xbf16> to vector<32x256xbf16>
    %cst_16 = arith.constant 0.000000e+00 : bf16
    %48 = vector.broadcast %cst_16 : bf16 to vector<32x256xbf16>
    %49 = vector.shape_cast %20 : vector<1x256xi1> to vector<1x256xi1>
    %50 = vector.broadcast %49 : vector<1x256xi1> to vector<32x256xi1>
    %51 = arith.select %50, %47, %48 : vector<32x256xi1>, vector<32x256xbf16>
    %52 = vector.extract_strided_slice %29 {offsets = [0, 143], sizes = [32, 256], strides = [1, 1]} : vector<32x512xbf16> to vector<32x256xbf16>
    %cst_17 = arith.constant 0.000000e+00 : bf16
    %53 = vector.broadcast %cst_17 : bf16 to vector<32x256xbf16>
    %54 = vector.shape_cast %18 : vector<1x256xi1> to vector<1x256xi1>
    %55 = vector.broadcast %54 : vector<1x256xi1> to vector<32x256xi1>
    %56 = arith.select %55, %52, %53 : vector<32x256xi1>, vector<32x256xbf16>
    %57 = vector.extract_strided_slice %29 {offsets = [0, 144], sizes = [32, 256], strides = [1, 1]} : vector<32x512xbf16> to vector<32x256xbf16>
    %58 = vector.extract_strided_slice %29 {offsets = [0, 145], sizes = [32, 256], strides = [1, 1]} : vector<32x512xbf16> to vector<32x256xbf16>
    %cst_18 = arith.constant 0.000000e+00 : bf16
    %59 = vector.broadcast %cst_18 : bf16 to vector<32x256xbf16>
    %60 = vector.shape_cast %20 : vector<1x256xi1> to vector<1x256xi1>
    %61 = vector.broadcast %60 : vector<1x256xi1> to vector<32x256xi1>
    %62 = arith.select %61, %58, %59 : vector<32x256xi1>, vector<32x256xbf16>
    %63 = tpu.concatenate %34, %35, %40, %45, %46, %51, %56, %57, %62 in 0 : vector<32x256xbf16>, vector<32x256xbf16>, vector<32x256xbf16>, vector<32x256xbf16>, vector<32x256xbf16>, vector<32x256xbf16>, vector<32x256xbf16>, vector<32x256xbf16>, vector<32x256xbf16> -> vector<288x256xbf16>
    %c0_19 = arith.constant 0 : index
    %c0_20 = arith.constant 0 : index
    %64 = vector.load %arg2[%c0_19, %c0_20] : memref<32x288xbf16, #tpu.memory_space<vmem>>, vector<32x288xbf16>
    %cst_21 = arith.constant dense<0.000000e+00> : vector<32x256xf32>
    %65 = tpu.matmul %64, %63, %cst_21 {dimension_numbers = #tpu.dot_dimension_numbers<[1], [0], [0], [1], [0, 0, 1, 1], [], []>} : vector<32x288xbf16>, vector<288x256xbf16>, vector<32x256xf32> -> vector<32x256xf32>
    %c0_22 = arith.constant 0 : index
    %c0_23 = arith.constant 0 : index
    %66 = vector.load %arg3[%c0_22, %c0_23] : memref<32x1xf32, #tpu.memory_space<vmem>>, vector<32x1xf32>
    %67 = vector.broadcast %66 : vector<32x1xf32> to vector<32x256xf32>
    %68 = arith.addf %65, %67 : vector<32x256xf32>
    %cst_24 = arith.constant 0.000000e+00 : f32
    %69 = vector.broadcast %cst_24 : f32 to vector<32x256xf32>
    %70 = arith.maximumf %68, %69 : vector<32x256xf32>
    %71 = arith.truncf %70 : vector<32x256xf32> to vector<32x256xbf16>
    %c0_25 = arith.constant 0 : index
    %c128_26 = arith.constant 128 : index
    %72 = vector.load %arg11[%c0_25, %c128_26] : memref<32x512xbf16, #tpu.memory_space<vmem>>, vector<32x256xbf16>
    tpu.vector_store %arg11[%c0_25, %c128_26], %71 {strides = array<i32>} : memref<32x512xbf16, #tpu.memory_space<vmem>>, vector<32x256xbf16>,
    %c0_27 = arith.constant 0 : index
    %c0_28 = arith.constant 0 : index
    %73 = vector.load %arg11[%c0_27, %c0_28] : memref<32x512xbf16, #tpu.memory_space<vmem>>, vector<32x512xbf16>
    %74 = vector.extract_strided_slice %73 {offsets = [0, 111], sizes = [32, 256], strides = [1, 1]} : vector<32x512xbf16> to vector<32x256xbf16>
    %cst_29 = arith.constant 0.000000e+00 : bf16
    %75 = vector.broadcast %cst_29 : bf16 to vector<32x256xbf16>
    %76 = vector.shape_cast %18 : vector<1x256xi1> to vector<1x256xi1>
    %77 = vector.broadcast %76 : vector<1x256xi1> to vector<32x256xi1>
    %78 = arith.select %77, %74, %75 : vector<32x256xi1>, vector<32x256xbf16>
    %79 = vector.extract_strided_slice %73 {offsets = [0, 112], sizes = [32, 256], strides = [1, 1]} : vector<32x512xbf16> to vector<32x256xbf16>
    %80 = vector.extract_strided_slice %73 {offsets = [0, 113], sizes = [32, 256], strides = [1, 1]} : vector<32x512xbf16> to vector<32x256xbf16>
    %cst_30 = arith.constant 0.000000e+00 : bf16
    %81 = vector.broadcast %cst_30 : bf16 to vector<32x256xbf16>
    %82 = vector.shape_cast %20 : vector<1x256xi1> to vector<1x256xi1>
    %83 = vector.broadcast %82 : vector<1x256xi1> to vector<32x256xi1>
    %84 = arith.select %83, %80, %81 : vector<32x256xi1>, vector<32x256xbf16>
    %85 = vector.extract_strided_slice %73 {offsets = [0, 127], sizes = [32, 256], strides = [1, 1]} : vector<32x512xbf16> to vector<32x256xbf16>
    %cst_31 = arith.constant 0.000000e+00 : bf16
    %86 = vector.broadcast %cst_31 : bf16 to vector<32x256xbf16>
    %87 = vector.shape_cast %18 : vector<1x256xi1> to vector<1x256xi1>
    %88 = vector.broadcast %87 : vector<1x256xi1> to vector<32x256xi1>
    %89 = arith.select %88, %85, %86 : vector<32x256xi1>, vector<32x256xbf16>
    %90 = vector.extract_strided_slice %73 {offsets = [0, 128], sizes = [32, 256], strides = [1, 1]} : vector<32x512xbf16> to vector<32x256xbf16>
    %91 = vector.extract_strided_slice %73 {offsets = [0, 129], sizes = [32, 256], strides = [1, 1]} : vector<32x512xbf16> to vector<32x256xbf16>
    %cst_32 = arith.constant 0.000000e+00 : bf16
    %92 = vector.broadcast %cst_32 : bf16 to vector<32x256xbf16>
    %93 = vector.shape_cast %20 : vector<1x256xi1> to vector<1x256xi1>
    %94 = vector.broadcast %93 : vector<1x256xi1> to vector<32x256xi1>
    %95 = arith.select %94, %91, %92 : vector<32x256xi1>, vector<32x256xbf16>
    %96 = vector.extract_strided_slice %73 {offsets = [0, 143], sizes = [32, 256], strides = [1, 1]} : vector<32x512xbf16> to vector<32x256xbf16>
    %cst_33 = arith.constant 0.000000e+00 : bf16
    %97 = vector.broadcast %cst_33 : bf16 to vector<32x256xbf16>
    %98 = vector.shape_cast %18 : vector<1x256xi1> to vector<1x256xi1>
    %99 = vector.broadcast %98 : vector<1x256xi1> to vector<32x256xi1>
    %100 = arith.select %99, %96, %97 : vector<32x256xi1>, vector<32x256xbf16>
    %101 = vector.extract_strided_slice %73 {offsets = [0, 144], sizes = [32, 256], strides = [1, 1]} : vector<32x512xbf16> to vector<32x256xbf16>
    %102 = vector.extract_strided_slice %73 {offsets = [0, 145], sizes = [32, 256], strides = [1, 1]} : vector<32x512xbf16> to vector<32x256xbf16>
    %cst_34 = arith.constant 0.000000e+00 : bf16
    %103 = vector.broadcast %cst_34 : bf16 to vector<32x256xbf16>
    %104 = vector.shape_cast %20 : vector<1x256xi1> to vector<1x256xi1>
    %105 = vector.broadcast %104 : vector<1x256xi1> to vector<32x256xi1>
    %106 = arith.select %105, %102, %103 : vector<32x256xi1>, vector<32x256xbf16>
    %107 = tpu.concatenate %78, %79, %84, %89, %90, %95, %100, %101, %106 in 0 : vector<32x256xbf16>, vector<32x256xbf16>, vector<32x256xbf16>, vector<32x256xbf16>, vector<32x256xbf16>, vector<32x256xbf16>, vector<32x256xbf16>, vector<32x256xbf16>, vector<32x256xbf16> -> vector<288x256xbf16>
    %c0_35 = arith.constant 0 : index
    %c0_36 = arith.constant 0 : index
    %108 = vector.load %arg4[%c0_35, %c0_36] : memref<32x288xbf16, #tpu.memory_space<vmem>>, vector<32x288xbf16>
    %cst_37 = arith.constant dense<0.000000e+00> : vector<32x256xf32>
    %109 = tpu.matmul %108, %107, %cst_37 {dimension_numbers = #tpu.dot_dimension_numbers<[1], [0], [0], [1], [0, 0, 1, 1], [], []>} : vector<32x288xbf16>, vector<288x256xbf16>, vector<32x256xf32> -> vector<32x256xf32>
    %c0_38 = arith.constant 0 : index
    %c0_39 = arith.constant 0 : index
    %110 = vector.load %arg5[%c0_38, %c0_39] : memref<32x1xf32, #tpu.memory_space<vmem>>, vector<32x1xf32>
    %111 = vector.broadcast %110 : vector<32x1xf32> to vector<32x256xf32>
    %112 = arith.addf %109, %111 : vector<32x256xf32>
    %cst_40 = arith.constant dense<0.000000e+00> : vector<32xf32>
    %113 = vector.multi_reduction <add>, %112, %cst_40 [1] : vector<32x256xf32> to vector<32xf32>
    %114 = vector.shape_cast %113 : vector<32xf32> to vector<32x1xf32>
    %c0_41 = arith.constant 0 : index
    %c0_42 = arith.constant 0 : index
    %115 = vector.load %arg6[%c0_41, %c0_42] : memref<32x2xf32, #tpu.memory_space<vmem>>, vector<32x2xf32>
    %116 = vector.broadcast %114 : vector<32x1xf32> to vector<32x2xf32>
    %117 = arith.mulf %116, %115 : vector<32x2xf32>
    %cst_43 = arith.constant dense<0.000000e+00> : vector<2xf32>
    %118 = vector.multi_reduction <add>, %117, %cst_43 [0] : vector<32x2xf32> to vector<2xf32>
    %119 = vector.shape_cast %118 : vector<2xf32> to vector<1x2xf32>
    %c0_44 = arith.constant 0 : index
    %c0_45 = arith.constant 0 : index
    %120 = vector.load %arg7[%c0_44, %c0_45] : memref<1x2xf32, #tpu.memory_space<vmem>>, vector<1x2xf32>
    %121 = arith.addf %119, %120 : vector<1x2xf32>
    %cst_46 = arith.constant 0.000000e+00 : f32
    %122 = vector.broadcast %cst_46 : f32 to vector<1x2xf32>
    %123 = arith.maximumf %121, %122 : vector<1x2xf32>
    %c0_47 = arith.constant 0 : index
    %c0_48 = arith.constant 0 : index
    %124 = vector.load %arg8[%c0_47, %c0_48] : memref<32x2xf32, #tpu.memory_space<vmem>>, vector<32x2xf32>
    %125 = vector.broadcast %123 : vector<1x2xf32> to vector<32x2xf32>
    %126 = arith.mulf %124, %125 : vector<32x2xf32>
    %cst_49 = arith.constant dense<0.000000e+00> : vector<32xf32>
    %127 = vector.multi_reduction <add>, %126, %cst_49 [1] : vector<32x2xf32> to vector<32xf32>
    %128 = vector.shape_cast %127 : vector<32xf32> to vector<32x1xf32>
    %c0_50 = arith.constant 0 : index
    %c0_51 = arith.constant 0 : index
    %129 = vector.load %arg9[%c0_50, %c0_51] : memref<32x1xf32, #tpu.memory_space<vmem>>, vector<32x1xf32>
    %130 = arith.addf %128, %129 : vector<32x1xf32>
    %131 = arith.negf %130 : vector<32x1xf32>
    %132 = math.exp %131 : vector<32x1xf32>
    %cst_52 = arith.constant 1.000000e+00 : f32
    %133 = vector.broadcast %cst_52 : f32 to vector<32x1xf32>
    %134 = arith.addf %133, %132 : vector<32x1xf32>
    %135 = arith.divf %133, %134 : vector<32x1xf32>
    %cst_53 = arith.constant 1.000000e+00 : f32
    %136 = vector.broadcast %cst_53 : f32 to vector<32x1xf32>
    %137 = arith.mulf %135, %136 : vector<32x1xf32>
    %c0_54 = arith.constant 0 : index
    %c0_55 = arith.constant 0 : index
    %c0_56 = arith.constant 0 : index
    %138 = vector.load %arg1[%c0_54, %c0_55, %c0_56] : memref<1x32x256xf32, #tpu.memory_space<vmem>>, vector<1x32x256xf32>
    %139 = vector.shape_cast %138 : vector<1x32x256xf32> to vector<32x256xf32>
    %140 = vector.broadcast %137 : vector<32x1xf32> to vector<32x256xf32>
    %141 = arith.mulf %112, %140 : vector<32x256xf32>
    %142 = arith.addf %139, %141 : vector<32x256xf32>
    %143 = vector.shape_cast %142 : vector<32x256xf32> to vector<1x32x256xf32>
    %c0_57 = arith.constant 0 : index
    %c0_58 = arith.constant 0 : index
    %c0_59 = arith.constant 0 : index
    %144 = vector.load %arg10[%c0_57, %c0_58, %c0_59] : memref<1x32x256xf32, #tpu.memory_space<vmem>>, vector<1x32x256xf32>
    tpu.vector_store %arg10[%c0_57, %c0_58, %c0_59], %143 {strides = array<i32>} : memref<1x32x256xf32, #tpu.memory_space<vmem>>, vector<1x32x256xf32>,
    return
  }
  func.func @transform_0(%arg0: i32) -> (i32, i32, i32) {
    %c0_i32 = arith.constant 0 : i32
    %c0_i32_0 = arith.constant 0 : i32
    %c0_i32_1 = arith.constant 0 : i32
    return %arg0, %c0_i32, %c0_i32_0 : i32, i32, i32
  }
  func.func @transform_1(%arg0: i32) -> (i32, i32) {
    %c0_i32 = arith.constant 0 : i32
    %c0_i32_0 = arith.constant 0 : i32
    %c0_i32_1 = arith.constant 0 : i32
    return %c0_i32, %c0_i32_0 : i32, i32
  }
  func.func @transform_2(%arg0: i32) -> (i32, i32) {
    %c0_i32 = arith.constant 0 : i32
    %c0_i32_0 = arith.constant 0 : i32
    %c0_i32_1 = arith.constant 0 : i32
    return %c0_i32, %c0_i32_0 : i32, i32
  }
  func.func @transform_3(%arg0: i32) -> (i32, i32) {
    %c0_i32 = arith.constant 0 : i32
    %c0_i32_0 = arith.constant 0 : i32
    %c0_i32_1 = arith.constant 0 : i32
    return %c0_i32, %c0_i32_0 : i32, i32
  }
  func.func @transform_4(%arg0: i32) -> (i32, i32) {
    %c0_i32 = arith.constant 0 : i32
    %c0_i32_0 = arith.constant 0 : i32
    %c0_i32_1 = arith.constant 0 : i32
    return %c0_i32, %c0_i32_0 : i32, i32
  }
  func.func @transform_5(%arg0: i32) -> (i32, i32) {
    %c0_i32 = arith.constant 0 : i32
    %c0_i32_0 = arith.constant 0 : i32
    %c0_i32_1 = arith.constant 0 : i32
    return %c0_i32, %c0_i32_0 : i32, i32
  }
  func.func @transform_6(%arg0: i32) -> (i32, i32) {
    %c0_i32 = arith.constant 0 : i32
    %c0_i32_0 = arith.constant 0 : i32
    %c0_i32_1 = arith.constant 0 : i32
    return %c0_i32, %c0_i32_0 : i32, i32
  }
  func.func @transform_7(%arg0: i32) -> (i32, i32) {
    %c0_i32 = arith.constant 0 : i32
    %c0_i32_0 = arith.constant 0 : i32
    %c0_i32_1 = arith.constant 0 : i32
    return %c0_i32, %c0_i32_0 : i32, i32
  }
  func.func @transform_8(%arg0: i32) -> (i32, i32) {
    %c0_i32 = arith.constant 0 : i32
    %c0_i32_0 = arith.constant 0 : i32
    %c0_i32_1 = arith.constant 0 : i32
    return %c0_i32, %c0_i32_0 : i32, i32
  }
  func.func @transform_9(%arg0: i32) -> (i32, i32, i32) {
    %c0_i32 = arith.constant 0 : i32
    %c0_i32_0 = arith.constant 0 : i32
    %c0_i32_1 = arith.constant 0 : i32
    return %arg0, %c0_i32, %c0_i32_0 : i32, i32, i32
  }
}

</mosaic_0001>

<llo_original>
// kernel: tpu_custom_call.1
$region0: #{tpu_custom_call.1}
  #allocation0 [shape = 'u32[]', space=smem, size = 0x4, offset = 0x4, fixed_abs, tag = 'smem constant byte address 0x4 - core index']
  #allocation1 [shape = 'u32[144,128]{1,0:T(1,128)}', space=vmem, size = 0x12000, scoped, tag = 'internal scratch']
  #allocation2 [shape = 'bf16[32,512]{1,0:T(8,128)(2,1)}', space=vmem, size = 0x8000, scoped, tag = 'scratch operand']
  %s0 = inlined_call_operand.vmem [shape: f32[2,32,256], index: 0, kind: input, shape index: {}]
  %s1 = inlined_call_operand.hbm [shape: bf16[32,288], index: 1, kind: input, shape index: {}]
  %s2 = inlined_call_operand.vmem [shape: f32[32,1], index: 2, kind: input, shape index: {}]
  %s3 = inlined_call_operand.hbm [shape: bf16[32,288], index: 3, kind: input, shape index: {}]
  %s4 = inlined_call_operand.vmem [shape: f32[32,1], index: 4, kind: input, shape index: {}]
  %s5 = inlined_call_operand.vmem [shape: f32[32,2], index: 5, kind: input, shape index: {}]
  %s6 = inlined_call_operand.vmem [shape: f32[1,2], index: 6, kind: input, shape index: {}]
  %s7 = inlined_call_operand.vmem [shape: f32[32,2], index: 7, kind: input, shape index: {}]
  %s8 = inlined_call_operand.vmem [shape: f32[32,1], index: 8, kind: input, shape index: {}]
  %s9 = inlined_call_operand.hbm [shape: f32[2,32,256], index: 9, kind: output, shape index: {}]
  %s10 = sld [smem:[#allocation0]]
  $region77: #{tpu_custom_call.1} parent=0
    _
  %s12 = ssub.s32 1, %s10
  %s13 = scalar_select 0, %s12, %s10
  $region1: #{tpu_custom_call.1} parent=0
    #allocation3 [shape = 'u8[24576]{0}', space=vmem, size = 0x6000, scoped, tag = 'input window, operand 1, single buffered']
    #allocation4 [shape = 's32[2]{0}', space=sflag, size = 0x8, scoped, tag = 'scoped memory for tpu_custom_call.1']
    #allocation5 [shape = 's32[2]{0}', space=sflag, size = 0x8, scoped, tag = 'scoped memory for tpu_custom_call.1']
    #allocation6 [shape = 'u8[24576]{0}', space=vmem, size = 0x6000, scoped, tag = 'input window, operand 3, single buffered']
    #allocation7 [shape = 's32[1]{0}', space=sflag, size = 0x4, scoped, tag = 'scoped memory for tpu_custom_call.1']
    #allocation8 [shape = 'u8[65536]{0}', space=vmem, size = 0x10000, scoped, tag = 'output window, operand 0']
    %14 = vsyncpa [#allocation4], 0
    %15 = vsyncpa [#allocation7], 0
    %16 = vsyncpa [#allocation5], 0
    %s17 = scalar_lea.sflag [#allocation5], 1
    %18 = vsyncpa %s17, 0
    loop: start=0, step=1, limit=4
    $region2: #{tpu_custom_call.1} parent=1 // loop_pre_header
      _
    $region3: #{tpu_custom_call.1} parent=1 // loop_header
      %s20 = sphi 0, %s24
      %p21 = scmp.ge.s32.totalorder %s20, 4
      %s30 = sphi 0, %s32
      %s33 = sphi 0, %s30
      %s34 = sphi 0, %s33
      %s50 = sphi 0, %s34
      %s54 = sphi 0, %s54
      %s56 = sphi 0, %s54
      %s57 = sphi 0, %s56
      %s71 = sphi 0, %s57
      %s75 = sphi 0, %s75
      %s77 = sphi 0, %s75
      %s78 = sphi 0, %s77
      %s92 = sphi 0, %s78
      %s96 = sphi 0, %s96
      %s98 = sphi 0, %s96
      %s99 = sphi 0, %s98
      %s113 = sphi 0, %s99
      %s117 = sphi 0, %s117
      %s119 = sphi 0, %s117
      %s120 = sphi 0, %s119
      %s134 = sphi 0, %s120
      %s138 = sphi 0, %s138
      %s140 = sphi 0, %s138
      %s141 = sphi 0, %s140
      %s155 = sphi 0, %s141
      %s159 = sphi 0, %s159
      %s161 = sphi 0, %s159
      %s162 = sphi 0, %s161
      %s176 = sphi 0, %s162
      %s180 = sphi 0, %s180
      %s182 = sphi 0, %s180
      %s183 = sphi 0, %s182
      %s197 = sphi 0, %s183
      %s201 = sphi 0, %s201
      %s203 = sphi 0, %s201
      %s204 = sphi 0, %s203
      %s218 = sphi 0, %s204
      %s224 = sphi 0, %s226
      %s227 = sphi 0, %s224
      %s228 = sphi 0, %s227
      %s244 = sphi 0, %s228
    $region4: #{tpu_custom_call.1} parent=1 // loop_header_branch
      %23 = sbr.rel (%p21) target = $region8
    $region5: #{tpu_custom_call.1} parent=1 // loop_body
      %s25 = ssub.s32 %s20, 1
      %s26 = ssub.s32 %s20, 2
      %s27 = sadd.s32 %s20, 1
      %s28 = ssub.s32 %s20, %s27
      %p29 = scmp.eq.s32.totalorder %s28, 0
      %s31 = sadd.s32 %s30, 1
      %s32 = scalar_select %p29, %s30, %s31
      %p35 = pneg %p29
      %p36 = scmp.eq.s32.totalorder %s20, 1
      %p37 = por %p35, %p36
      %p38 = scmp.ne.s32.totalorder %s30, %s33
      %p39 = scmp.eq.s32.totalorder %s20, 0
      %p40 = por %p38, %p39
      %p41 = scmp.ne.s32.totalorder %s30, %s33
      %p42 = scmp.eq.s32.totalorder %s25, 1
      %p43 = por %p41, %p42
      %p44 = scmp.ne.s32.totalorder %s33, %s34
      %p45 = scmp.eq.s32.totalorder %s25, 0
      %p46 = por %p44, %p45
      %p47 = scmp.ne.s32.totalorder %s33, %s34
      %p48 = scmp.eq.s32.totalorder %s26, 1
      %p49 = por %p47, %p48
      %p51 = scmp.ne.s32.totalorder %s34, %s50
      %p52 = scmp.eq.s32.totalorder %s26, 0
      %p53 = por %p51, %p52
      %s55 = sadd.s32 %s54, 1
      %p58 = scmp.eq.s32.totalorder %s20, 1
      %p59 = scmp.ne.s32.totalorder %s54, %s56
      %p60 = scmp.eq.s32.totalorder %s20, 0
      %p61 = por %p59, %p60
      %p62 = scmp.ne.s32.totalorder %s54, %s56
      %p63 = scmp.eq.s32.totalorder %s25, 1
      %p64 = por %p62, %p63
      %p65 = scmp.ne.s32.totalorder %s56, %s57
      %p66 = scmp.eq.s32.totalorder %s25, 0
      %p67 = por %p65, %p66
      %p68 = scmp.ne.s32.totalorder %s56, %s57
      %p69 = scmp.eq.s32.totalorder %s26, 1
      %p70 = por %p68, %p69
      %p72 = scmp.ne.s32.totalorder %s57, %s71
      %p73 = scmp.eq.s32.totalorder %s26, 0
      %p74 = por %p72, %p73
      %s76 = sadd.s32 %s75, 1
      %p79 = scmp.eq.s32.totalorder %s20, 1
      %p80 = scmp.ne.s32.totalorder %s75, %s77
      %p81 = scmp.eq.s32.totalorder %s20, 0
      %p82 = por %p80, %p81
      %p83 = scmp.ne.s32.totalorder %s75, %s77
      %p84 = scmp.eq.s32.totalorder %s25, 1
      %p85 = por %p83, %p84
      %p86 = scmp.ne.s32.totalorder %s77, %s78
      %p87 = scmp.eq.s32.totalorder %s25, 0
      %p88 = por %p86, %p87
      %p89 = scmp.ne.s32.totalorder %s77, %s78
      %p90 = scmp.eq.s32.totalorder %s26, 1
      %p91 = por %p89, %p90
      %p93 = scmp.ne.s32.totalorder %s78, %s92
      %p94 = scmp.eq.s32.totalorder %s26, 0
      %p95 = por %p93, %p94
      %s97 = sadd.s32 %s96, 1
      %p100 = scmp.eq.s32.totalorder %s20, 1
      %p101 = scmp.ne.s32.totalorder %s96, %s98
      %p102 = scmp.eq.s32.totalorder %s20, 0
      %p103 = por %p101, %p102
      %p104 = scmp.ne.s32.totalorder %s96, %s98
      %p105 = scmp.eq.s32.totalorder %s25, 1
      %p106 = por %p104, %p105
      %p107 = scmp.ne.s32.totalorder %s98, %s99
      %p108 = scmp.eq.s32.totalorder %s25, 0
      %p109 = por %p107, %p108
      %p110 = scmp.ne.s32.totalorder %s98, %s99
      %p111 = scmp.eq.s32.totalorder %s26, 1
      %p112 = por %p110, %p111
      %p114 = scmp.ne.s32.totalorder %s99, %s113
      %p115 = scmp.eq.s32.totalorder %s26, 0
      %p116 = por %p114, %p115
      %s118 = sadd.s32 %s117, 1
      %p121 = scmp.eq.s32.totalorder %s20, 1
      %p122 = scmp.ne.s32.totalorder %s117, %s119
      %p123 = scmp.eq.s32.totalorder %s20, 0
      %p124 = por %p122, %p123
      %p125 = scmp.ne.s32.totalorder %s117, %s119
      %p126 = scmp.eq.s32.totalorder %s25, 1
      %p127 = por %p125, %p126
      %p128 = scmp.ne.s32.totalorder %s119, %s120
      %p129 = scmp.eq.s32.totalorder %s25, 0
      %p130 = por %p128, %p129
      %p131 = scmp.ne.s32.totalorder %s119, %s120
      %p132 = scmp.eq.s32.totalorder %s26, 1
      %p133 = por %p131, %p132
      %p135 = scmp.ne.s32.totalorder %s120, %s134
      %p136 = scmp.eq.s32.totalorder %s26, 0
      %p137 = por %p135, %p136
      %s139 = sadd.s32 %s138, 1
      %p142 = scmp.eq.s32.totalorder %s20, 1
      %p143 = scmp.ne.s32.totalorder %s138, %s140
      %p144 = scmp.eq.s32.totalorder %s20, 0
      %p145 = por %p143, %p144
      %p146 = scmp.ne.s32.totalorder %s138, %s140
      %p147 = scmp.eq.s32.totalorder %s25, 1
      %p148 = por %p146, %p147
      %p149 = scmp.ne.s32.totalorder %s140, %s141
      %p150 = scmp.eq.s32.totalorder %s25, 0
      %p151 = por %p149, %p150
      %p152 = scmp.ne.s32.totalorder %s140, %s141
      %p153 = scmp.eq.s32.totalorder %s26, 1
      %p154 = por %p152, %p153
      %p156 = scmp.ne.s32.totalorder %s141, %s155
      %p157 = scmp.eq.s32.totalorder %s26, 0
      %p158 = por %p156, %p157
      %s160 = sadd.s32 %s159, 1
      %p163 = scmp.eq.s32.totalorder %s20, 1
      %p164 = scmp.ne.s32.totalorder %s159, %s161
      %p165 = scmp.eq.s32.totalorder %s20, 0
      %p166 = por %p164, %p165
      %p167 = scmp.ne.s32.totalorder %s159, %s161
      %p168 = scmp.eq.s32.totalorder %s25, 1
      %p169 = por %p167, %p168
      %p170 = scmp.ne.s32.totalorder %s161, %s162
      %p171 = scmp.eq.s32.totalorder %s25, 0
      %p172 = por %p170, %p171
      %p173 = scmp.ne.s32.totalorder %s161, %s162
      %p174 = scmp.eq.s32.totalorder %s26, 1
      %p175 = por %p173, %p174
      %p177 = scmp.ne.s32.totalorder %s162, %s176
      %p178 = scmp.eq.s32.totalorder %s26, 0
      %p179 = por %p177, %p178
      %s181 = sadd.s32 %s180, 1
      %p184 = scmp.eq.s32.totalorder %s20, 1
      %p185 = scmp.ne.s32.totalorder %s180, %s182
      %p186 = scmp.eq.s32.totalorder %s20, 0
      %p187 = por %p185, %p186
      %p188 = scmp.ne.s32.totalorder %s180, %s182
      %p189 = scmp.eq.s32.totalorder %s25, 1
      %p190 = por %p188, %p189
      %p191 = scmp.ne.s32.totalorder %s182, %s183
      %p192 = scmp.eq.s32.totalorder %s25, 0
      %p193 = por %p191, %p192
      %p194 = scmp.ne.s32.totalorder %s182, %s183
      %p195 = scmp.eq.s32.totalorder %s26, 1
      %p196 = por %p194, %p195
      %p198 = scmp.ne.s32.totalorder %s183, %s197
      %p199 = scmp.eq.s32.totalorder %s26, 0
      %p200 = por %p198, %p199
      %s202 = sadd.s32 %s201, 1
      %p205 = scmp.eq.s32.totalorder %s20, 1
      %p206 = scmp.ne.s32.totalorder %s201, %s203
      %p207 = scmp.eq.s32.totalorder %s20, 0
      %p208 = por %p206, %p207
      %p209 = scmp.ne.s32.totalorder %s201, %s203
      %p210 = scmp.eq.s32.totalorder %s25, 1
      %p211 = por %p209, %p210
      %p212 = scmp.ne.s32.totalorder %s203, %s204
      %p213 = scmp.eq.s32.totalorder %s25, 0
      %p214 = por %p212, %p213
      %p215 = scmp.ne.s32.totalorder %s203, %s204
      %p216 = scmp.eq.s32.totalorder %s26, 1
      %p217 = por %p215, %p216
      %p219 = scmp.ne.s32.totalorder %s204, %s218
      %p220 = scmp.eq.s32.totalorder %s26, 0
      %p221 = por %p219, %p220
      %s222 = ssub.s32 %s20, %s27
      %p223 = scmp.eq.s32.totalorder %s222, 0
      %s225 = sadd.s32 %s224, 1
      %s226 = scalar_select %p223, %s224, %s225
      %p229 = pneg %p223
      %p230 = scmp.eq.s32.totalorder %s20, 1
      %p231 = por %p229, %p230
      %p232 = scmp.ne.s32.totalorder %s224, %s227
      %p233 = scmp.eq.s32.totalorder %s20, 0
      %p234 = por %p232, %p233
      %p235 = scmp.ne.s32.totalorder %s224, %s227
      %p236 = scmp.eq.s32.totalorder %s25, 1
      %p237 = por %p235, %p236
      %p238 = scmp.ne.s32.totalorder %s227, %s228
      %p239 = scmp.eq.s32.totalorder %s25, 0
      %p240 = por %p238, %p239
      %p241 = scmp.ne.s32.totalorder %s227, %s228
      %p242 = scmp.eq.s32.totalorder %s26, 1
      %p243 = por %p241, %p242
      %p245 = scmp.ne.s32.totalorder %s228, %s244
      %p246 = scmp.eq.s32.totalorder %s26, 0
      %p247 = por %p245, %p246
      %p248 = scmp.le.s32.totalorder 1, %s20
      %p249 = scmp.lt.s32.totalorder %s20, 3
      %p250 = pnand %p248, %p249
      %p251 = pneg %p250
      // Predicated region
      $region9: #{tpu_custom_call.1} parent=5 // pred_check
        _
      $region10: #{tpu_custom_call.1} parent=5 // pred_check_branch
        %253 = sbr.rel (%p250) target = $region12
      $region11: #{tpu_custom_call.1} parent=5 // pred_region
        %s254 = ssub.s32 %s20, 1
        // Predicated region
        $region13: #{tpu_custom_call.1} parent=11 // pred_check
          %p255 = pneg %p67
        $region14: #{tpu_custom_call.1} parent=11 // pred_check_branch
          %257 = sbr.rel (%p255) target = $region16
        $region15: #{tpu_custom_call.1} parent=11 // pred_region
          %s259 = ssub.s32 768, 768
          %260 = vsyncadd [#allocation4], %s259
          %s261 = sshll.u32 [#allocation3], 4
          %s262 = int_to_ptr.vmem [resolvable:$true] %s261
          %267 = dma.hbm_to_vmem [thread:$0]  %s1, 768, %s262, [#allocation4], 192, 192, 12
        $region16: #{tpu_custom_call.1} parent=11 // pred_fallthru
          _
        // Predicated region
        $region17: #{tpu_custom_call.1} parent=11 // pred_check
          %p268 = pneg %p88
        $region18: #{tpu_custom_call.1} parent=11 // pred_check_branch
          %270 = sbr.rel (%p268) target = $region20
        $region19: #{tpu_custom_call.1} parent=11 // pred_region
          _
        $region20: #{tpu_custom_call.1} parent=11 // pred_fallthru
          _
        // Predicated region
        $region21: #{tpu_custom_call.1} parent=11 // pred_check
          %p271 = pneg %p109
        $region22: #{tpu_custom_call.1} parent=11 // pred_check_branch
          %273 = sbr.rel (%p271) target = $region24
        $region23: #{tpu_custom_call.1} parent=11 // pred_region
          %s275 = ssub.s32 768, 768
          %276 = vsyncadd [#allocation7], %s275
          %s277 = sshll.u32 [#allocation6], 4
          %s278 = int_to_ptr.vmem [resolvable:$true] %s277
          %283 = dma.hbm_to_vmem [thread:$0]  %s3, 768, %s278, [#allocation7], 192, 192, 12
        $region24: #{tpu_custom_call.1} parent=11 // pred_fallthru
          _
        // Predicated region
        $region25: #{tpu_custom_call.1} parent=11 // pred_check
          %p284 = pneg %p130
        $region26: #{tpu_custom_call.1} parent=11 // pred_check_branch
          %286 = sbr.rel (%p284) target = $region28
        $region27: #{tpu_custom_call.1} parent=11 // pred_region
          _
        $region28: #{tpu_custom_call.1} parent=11 // pred_fallthru
          _
        // Predicated region
        $region29: #{tpu_custom_call.1} parent=11 // pred_check
          %p287 = pneg %p151
        $region30: #{tpu_custom_call.1} parent=11 // pred_check_branch
          %289 = sbr.rel (%p287) target = $region32
        $region31: #{tpu_custom_call.1} parent=11 // pred_region
          _
        $region32: #{tpu_custom_call.1} parent=11 // pred_fallthru
          _
        // Predicated region
        $region33: #{tpu_custom_call.1} parent=11 // pred_check
          %p290 = pneg %p172
        $region34: #{tpu_custom_call.1} parent=11 // pred_check_branch
          %292 = sbr.rel (%p290) target = $region36
        $region35: #{tpu_custom_call.1} parent=11 // pred_region
          _
        $region36: #{tpu_custom_call.1} parent=11 // pred_fallthru
          _
        // Predicated region
        $region37: #{tpu_custom_call.1} parent=11 // pred_check
          %p293 = pneg %p193
        $region38: #{tpu_custom_call.1} parent=11 // pred_check_branch
          %295 = sbr.rel (%p293) target = $region40
        $region39: #{tpu_custom_call.1} parent=11 // pred_region
          _
        $region40: #{tpu_custom_call.1} parent=11 // pred_fallthru
          _
        // Predicated region
        $region41: #{tpu_custom_call.1} parent=11 // pred_check
          %p296 = pneg %p214
        $region42: #{tpu_custom_call.1} parent=11 // pred_check_branch
          %298 = sbr.rel (%p296) target = $region44
        $region43: #{tpu_custom_call.1} parent=11 // pred_region
          _
        $region44: #{tpu_custom_call.1} parent=11 // pred_fallthru
          _
      $region12: #{tpu_custom_call.1} parent=5 // pred_fallthru
        _
      %p299 = scmp.lt.s32.totalorder %s20, 2
      // Predicated region
      $region45: #{tpu_custom_call.1} parent=5 // pred_check
        %p300 = pneg %p299
      $region46: #{tpu_custom_call.1} parent=5 // pred_check_branch
        %302 = sbr.rel (%p300) target = $region48
      $region47: #{tpu_custom_call.1} parent=5 // pred_region
        // Predicated region
        $region49: #{tpu_custom_call.1} parent=47 // pred_check
          %p303 = pneg %p40
        $region50: #{tpu_custom_call.1} parent=47 // pred_check_branch
          %305 = sbr.rel (%p303) target = $region52
        $region51: #{tpu_custom_call.1} parent=47 // pred_region
          %p306 = scmp.lt.s32.totalorder %s20, 1
          %s307 = scalar_select %p306, %s20, 1
          %s308 = smul.addr %s307, 8
          %s309 = smul.addr %s308, 8
          %s310 = scalar_lea.vmem %s0, %s309
        $region52: #{tpu_custom_call.1} parent=47 // pred_fallthru
          _
      $region48: #{tpu_custom_call.1} parent=5 // pred_fallthru
        _
      %p311 = scmp.le.s32.totalorder 1, %s20
      %p312 = scmp.lt.s32.totalorder %s20, 3
      %p313 = pnand %p311, %p312
      %p314 = pneg %p313
      // Predicated region
      $region53: #{tpu_custom_call.1} parent=5 // pred_check
        _
      $region54: #{tpu_custom_call.1} parent=5 // pred_check_branch
        %316 = sbr.rel (%p313) target = $region56
      $region55: #{tpu_custom_call.1} parent=5 // pred_region
        %s317 = ssub.s32 %s20, 1
        // Predicated region
        $region57: #{tpu_custom_call.1} parent=55 // pred_check
          %p318 = pneg %p67
        $region58: #{tpu_custom_call.1} parent=55 // pred_check_branch
          %320 = sbr.rel (%p318) target = $region60
        $region59: #{tpu_custom_call.1} parent=55 // pred_region
          %321 = dma.done [#allocation4], 768
        $region60: #{tpu_custom_call.1} parent=55 // pred_fallthru
          _
        // Predicated region
        $region61: #{tpu_custom_call.1} parent=55 // pred_check
          %p322 = pneg %p109
        $region62: #{tpu_custom_call.1} parent=55 // pred_check_branch
          %324 = sbr.rel (%p322) target = $region64
        $region63: #{tpu_custom_call.1} parent=55 // pred_region
          %325 = dma.done [#allocation7], 768
        $region64: #{tpu_custom_call.1} parent=55 // pred_fallthru
          _
        %p326 = scmp.lt.s32.totalorder %s25, 1
        %s327 = scalar_select %p326, %s25, 1
        %s328 = smul.addr %s327, 8
        %s329 = smul.addr %s328, 8
        %s330 = scalar_lea.vmem %s0, %s329
        %p331 = pneg %p46
        %p332 = pneg %p43
        %p333 = pneg %p67
        %p334 = pneg %p64
        %p335 = pneg %p88
        %p336 = pneg %p85
        %p337 = pneg %p109
        %p338 = pneg %p106
        %p339 = pneg %p130
        %p340 = pneg %p127
        %p341 = pneg %p151
        %p342 = pneg %p148
        %p343 = pneg %p172
        %p344 = pneg %p169
        %p345 = pneg %p193
        %p346 = pneg %p190
        %p347 = pneg %p214
        %p348 = pneg %p211
        %p349 = pneg %p240
        %p350 = pneg %p237
        %s351 = sand.u32 %s227, 1
        %s352 = scalar_lea.sflag [#allocation5], %s351
        %s353 = sand.u32 %s227, 1
        %s354 = smul.addr %s353, 64
        %s355 = scalar_lea.vmem [#allocation8], %s354
        %p356 = scmp.lt.s32.totalorder %s25, 1
        %s357 = scalar_select %p356, %s25, 1
        %s358 = smul.addr %s357, 8
        %s359 = smul.addr %s358, 8
        %s360 = scalar_lea.vmem %s0, %s359
        %v364 = vlaneseq
        %v365 = vand.u32 %v364, 127
        %v366 = vadd.s32 %v365, 128
        %vm367 = vcmp.lt.s32.totalorder %v365, 0
        %v368 = vsub.s32 0, %v365
        %v369 = vsel %vm367, %v368, %v365
        %v370 = vshrl.u32 %v369, 4
        %v371 = vand.u32 %v369, 15
        %v372 = vsub.s32 0, %v371
        %v373 = vsel %vm367, %v372, %v371
        %vm374 = vcmp.lt.s32.totalorder %v366, 0
        %v375 = vsub.s32 0, %v366
        %v376 = vsel %vm374, %v375, %v366
        %v377 = vshrl.u32 %v376, 4
        %v378 = vand.u32 %v376, 15
        %v379 = vsub.s32 0, %v378
        %v380 = vsel %vm374, %v379, %v378
        %vm381 = vcmp.ne.s32.totalorder %v373, 0
        %vm382 = vcmp.ne.s32.totalorder %v380, 0
        %vm383 = vcmp.lt.s32.totalorder %v373, 0
        %vm384 = vcmp.lt.s32.totalorder %v380, 0
        %vm385 = vmand %vm383, %vm381
        %vm386 = vmand %vm384, %vm382
        %v387 = vadd.s32 %v373, 16
        %v388 = vadd.s32 %v380, 16
        %v389 = vsel %vm385, %v387, %v373
        %v390 = vsel %vm386, %v388, %v380
        %vm391 = vcmp.ne.s32.totalorder %v389, 0
        %vm392 = vcmp.ne.s32.totalorder %v390, 0
        %vm393 = vcmp.ne.s32.totalorder %v389, 15
        %vm394 = vcmp.ne.s32.totalorder %v390, 15
        %395 = vst [vmem:[#allocation2] sm:$0xf] 0
        %396 = vst [vmem:[#allocation2 + $0x10] sm:$0xf] 0
        %397 = vst [vmem:[#allocation2 + $0x20] sm:$0xf] 0
        %398 = vst [vmem:[#allocation2 + $0x30] sm:$0xf] 0
        %399 = vst [vmem:[#allocation2 + $0xc] sm:$0xf] 0
        %400 = vst [vmem:[#allocation2 + $0x1c] sm:$0xf] 0
        %401 = vst [vmem:[#allocation2 + $0x2c] sm:$0xf] 0
        %402 = vst [vmem:[#allocation2 + $0x3c] sm:$0xf] 0
        %v403 = vld [vmem:[%s360] sm:$0xff]
        %v404 = vld [vmem:[%s360 + $0x8] sm:$0xff]
        %v405 = vld [vmem:[%s360 + $0x10] sm:$0xff]
        %v406 = vld [vmem:[%s360 + $0x18] sm:$0xff]
        %v407 = vld [vmem:[%s360 + $0x20] sm:$0xff]
        %v408 = vld [vmem:[%s360 + $0x28] sm:$0xff]
        %v409 = vld [vmem:[%s360 + $0x30] sm:$0xff]
        %v410 = vld [vmem:[%s360 + $0x38] sm:$0xff]
        %v411 = vpack.c.bf16 %v405, %v403
        %v412 = vpack.c.bf16 %v406, %v404
        %v413 = vpack.c.bf16 %v409, %v407
        %v414 = vpack.c.bf16 %v410, %v408
        %v419 = vunpack.c.l.b16 %v411
        %v420 = vunpack.c.l.b16 %v412
        %v421 = vunpack.c.h.b16 %v411
        %v422 = vunpack.c.h.b16 %v412
        %v423 = vunpack.c.l.b16 %v413
        %v424 = vunpack.c.l.b16 %v414
        %v425 = vunpack.c.h.b16 %v413
        %v426 = vunpack.c.h.b16 %v414
        %v427 = vpack.c.b16 %v420, %v419
        %v428 = vpack.c.b16 %v422, %v421
        %v429 = vpack.c.b16 %v424, %v423
        %v430 = vpack.c.b16 %v426, %v425
        %435 = vst [vmem:[#allocation2 + $0x4] sm:$0xff] %v427
        %436 = vst [vmem:[#allocation2 + $0x14] sm:$0xff] %v428
        %437 = vst [vmem:[#allocation2 + $0x24] sm:$0xff] %v429
        %438 = vst [vmem:[#allocation2 + $0x34] sm:$0xff] %v430
        %v439 = vld [vmem:[#allocation2] sm:$0xff]
        %v440 = vld [vmem:[#allocation2 + $0x8] sm:$0xff]
        %v441 = vld [vmem:[#allocation2 + $0x10] sm:$0xff]
        %v442 = vld [vmem:[#allocation2 + $0x18] sm:$0xff]
        %v443 = vld [vmem:[#allocation2 + $0x20] sm:$0xff]
        %v444 = vld [vmem:[#allocation2 + $0x28] sm:$0xff]
        %v445 = vld [vmem:[#allocation2 + $0x30] sm:$0xff]
        %v446 = vld [vmem:[#allocation2 + $0x38] sm:$0xff]
        %v447 = vsel %vm391, 1, 0
        %v448 = vsel %vm392, 1, 0
        %vm449 = vcmp.eq.s32.totalorder %v447, 1
        %vm450 = vcmp.eq.s32.totalorder %v448, 1
        %vm451 = vmpackc.low %vm450, %vm449
        %v452 = vsel %vm451, 65537, 0
        %453 = vrot.lane.b32.xlu0 %v452, 111
        %v454 = vpop.permute.xlu0 %453
        %v455 = vrot.slane %v454, 4
        %vm456 = vcmask 908288
        %v457 = vsel %vm456, %v455, %v454
        %vm458 = vcmp.ne.s16.totalorder %v457, 0
        %vm459 = vcmp.ne.s16.totalorder %v455, 0
        %v460 = vsel %vm458, %v439, 0
        %v461 = vsel %vm459, %v440, 0
        %v462 = vsel %vm458, %v441, 0
        %v463 = vsel %vm459, %v442, 0
        %v464 = vsel %vm458, %v443, 0
        %v465 = vsel %vm459, %v444, 0
        %v466 = vsel %vm458, %v445, 0
        %v467 = vsel %vm459, %v446, 0
        %v468 = vsel %vm393, 1, 0
        %v469 = vsel %vm394, 1, 0
        %vm470 = vcmp.eq.s32.totalorder %v468, 1
        %vm471 = vcmp.eq.s32.totalorder %v469, 1
        %vm472 = vmpackc.low %vm471, %vm470
        %v473 = vsel %vm472, 65537, 0
        %474 = vrot.lane.b32.xlu0 %v473, 113
        %v475 = vpop.permute.xlu0 %474
        %v476 = vrot.slane %v475, 4
        %vm477 = vcmask 924672
        %v478 = vsel %vm477, %v476, %v475
        %vm479 = vcmp.ne.s16.totalorder %v478, 0
        %vm480 = vcmp.ne.s16.totalorder %v476, 0
        %v481 = vsel %vm479, %v439, 0
        %v482 = vsel %vm480, %v440, 0
        %v483 = vsel %vm479, %v441, 0
        %v484 = vsel %vm480, %v442, 0
        %v485 = vsel %vm479, %v443, 0
        %v486 = vsel %vm480, %v444, 0
        %v487 = vsel %vm479, %v445, 0
        %v488 = vsel %vm480, %v446, 0
        %489 = vrot.lane.b32.xlu0 %v452, 127
        %v490 = vpop.permute.xlu0 %489
        %v491 = vrot.slane %v490, 4
        %vm492 = vcmask 1039360
        %v493 = vsel %vm492, %v491, %v490
        %vm494 = vcmp.ne.s16.totalorder %v493, 0
        %vm495 = vcmp.ne.s16.totalorder %v491, 0
        %v496 = vsel %vm494, %v439, 0
        %v497 = vsel %vm495, %v440, 0
        %v498 = vsel %vm494, %v441, 0
        %v499 = vsel %vm495, %v442, 0
        %v500 = vsel %vm494, %v443, 0
        %v501 = vsel %vm495, %v444, 0
        %v502 = vsel %vm494, %v445, 0
        %v503 = vsel %vm495, %v446, 0
        %512 = vrot.lane.b32.xlu0 %v439, 127
        %v513 = vpop.permute.xlu0 %512
        %514 = vrot.lane.b32.xlu0 %v440, 127
        %v515 = vpop.permute.xlu0 %514
        %516 = vrot.lane.b32.xlu0 %v441, 127
        %v517 = vpop.permute.xlu0 %516
        %518 = vrot.lane.b32.xlu0 %v442, 127
        %v519 = vpop.permute.xlu0 %518
        %520 = vrot.lane.b32.xlu0 %v443, 127
        %v521 = vpop.permute.xlu0 %520
        %522 = vrot.lane.b32.xlu0 %v444, 127
        %v523 = vpop.permute.xlu0 %522
        %524 = vrot.lane.b32.xlu0 %v445, 127
        %v525 = vpop.permute.xlu0 %524
        %526 = vrot.lane.b32.xlu0 %v446, 127
        %v527 = vpop.permute.xlu0 %526
        %v528 = vrot.slane %v513, 4
        %v529 = vrot.slane %v515, 4
        %v530 = vrot.slane %v517, 4
        %v531 = vrot.slane %v519, 4
        %v532 = vrot.slane %v521, 4
        %v533 = vrot.slane %v523, 4
        %v534 = vrot.slane %v525, 4
        %v535 = vrot.slane %v527, 4
        %vm536 = vcmask 1043456
        %v537 = vsel %vm536, %v528, %v529
        %v538 = vsel %vm492, %v537, %v515
        %v539 = vsel %vm536, %v530, %v531
        %v540 = vsel %vm492, %v539, %v519
        %v541 = vsel %vm536, %v532, %v533
        %v542 = vsel %vm492, %v541, %v523
        %v543 = vsel %vm536, %v534, %v535
        %v544 = vsel %vm492, %v543, %v527
        %v549 = vsel %vm472, %v538, 0
        %v550 = vsel %vm472, %v540, 0
        %v551 = vsel %vm472, %v542, 0
        %v552 = vsel %vm472, %v544, 0
        %553 = vrot.lane.b32.xlu0 %v439, 113
        %v554 = vpop.permute.xlu0 %553
        %555 = vrot.lane.b32.xlu0 %v440, 113
        %v556 = vpop.permute.xlu0 %555
        %557 = vrot.lane.b32.xlu0 %v441, 113
        %v558 = vpop.permute.xlu0 %557
        %559 = vrot.lane.b32.xlu0 %v442, 113
        %v560 = vpop.permute.xlu0 %559
        %561 = vrot.lane.b32.xlu0 %v443, 113
        %v562 = vpop.permute.xlu0 %561
        %563 = vrot.lane.b32.xlu0 %v444, 113
        %v564 = vpop.permute.xlu0 %563
        %565 = vrot.lane.b32.xlu0 %v445, 113
        %v566 = vpop.permute.xlu0 %565
        %567 = vrot.lane.b32.xlu0 %v446, 113
        %v568 = vpop.permute.xlu0 %567
        %v569 = vrot.slane %v554, 4
        %v570 = vrot.slane %v556, 4
        %v571 = vrot.slane %v558, 4
        %v572 = vrot.slane %v560, 4
        %v573 = vrot.slane %v562, 4
        %v574 = vrot.slane %v564, 4
        %v575 = vrot.slane %v566, 4
        %v576 = vrot.slane %v568, 4
        %v577 = vsel %vm536, %v569, %v570
        %v578 = vsel %vm477, %v577, %v556
        %v579 = vsel %vm536, %v571, %v572
        %v580 = vsel %vm477, %v579, %v560
        %v581 = vsel %vm536, %v573, %v574
        %v582 = vsel %vm477, %v581, %v564
        %v583 = vsel %vm536, %v575, %v576
        %v584 = vsel %vm477, %v583, %v568
        %v589 = vsel %vm451, %v578, 0
        %v590 = vsel %vm451, %v580, 0
        %v591 = vsel %vm451, %v582, 0
        %v592 = vsel %vm451, %v584, 0
        %593 = vrot.lane.b32.xlu0 %v439, 111
        %v594 = vpop.permute.xlu0 %593
        %595 = vrot.lane.b32.xlu0 %v440, 111
        %v596 = vpop.permute.xlu0 %595
        %597 = vrot.lane.b32.xlu0 %v441, 111
        %v598 = vpop.permute.xlu0 %597
        %599 = vrot.lane.b32.xlu0 %v442, 111
        %v600 = vpop.permute.xlu0 %599
        %601 = vrot.lane.b32.xlu0 %v443, 111
        %v602 = vpop.permute.xlu0 %601
        %603 = vrot.lane.b32.xlu0 %v444, 111
        %v604 = vpop.permute.xlu0 %603
        %605 = vrot.lane.b32.xlu0 %v445, 111
        %v606 = vpop.permute.xlu0 %605
        %607 = vrot.lane.b32.xlu0 %v446, 111
        %v608 = vpop.permute.xlu0 %607
        %v609 = vrot.slane %v594, 4
        %v610 = vrot.slane %v596, 4
        %v611 = vrot.slane %v598, 4
        %v612 = vrot.slane %v600, 4
        %v613 = vrot.slane %v602, 4
        %v614 = vrot.slane %v604, 4
        %v615 = vrot.slane %v606, 4
        %v616 = vrot.slane %v608, 4
        %v617 = vsel %vm536, %v609, %v610
        %v618 = vsel %vm456, %v617, %v596
        %v619 = vsel %vm536, %v611, %v612
        %v620 = vsel %vm456, %v619, %v600
        %v621 = vsel %vm536, %v613, %v614
        %v622 = vsel %vm456, %v621, %v604
        %v623 = vsel %vm536, %v615, %v616
        %v624 = vsel %vm456, %v623, %v608
        %v629 = vsel %vm472, %v618, 0
        %v630 = vsel %vm472, %v620, 0
        %v631 = vsel %vm472, %v622, 0
        %v632 = vsel %vm472, %v624, 0
        %v641 = vunpack.c.l.b16 %v460
        %v642 = vunpack.c.h.b16 %v460
        %v643 = vunpack.c.l.b16 %v461
        %v644 = vunpack.c.l.b16 %v462
        %v645 = vunpack.c.h.b16 %v462
        %v646 = vunpack.c.l.b16 %v463
        %v647 = vunpack.c.l.b16 %v464
        %v648 = vunpack.c.h.b16 %v464
        %v649 = vunpack.c.l.b16 %v465
        %v650 = vunpack.c.l.b16 %v466
        %v651 = vunpack.c.h.b16 %v466
        %v652 = vunpack.c.l.b16 %v467
        %v653 = vpack.c.b16 %v644, %v641
        %v654 = vpack.c.b16 %v645, %v642
        %v655 = vpack.c.b16 %v646, %v643
        %v656 = vpack.c.b16 %v650, %v647
        %v657 = vpack.c.b16 %v651, %v648
        %v658 = vpack.c.b16 %v652, %v649
        %v659 = vunpack.c.l.b16 %v439
        %v660 = vunpack.c.h.b16 %v439
        %v661 = vunpack.c.l.b16 %v440
        %v662 = vunpack.c.l.b16 %v441
        %v663 = vunpack.c.h.b16 %v441
        %v664 = vunpack.c.l.b16 %v442
        %v665 = vunpack.c.l.b16 %v443
        %v666 = vunpack.c.h.b16 %v443
        %v667 = vunpack.c.l.b16 %v444
        %v668 = vunpack.c.l.b16 %v445
        %v669 = vunpack.c.h.b16 %v445
        %v670 = vunpack.c.l.b16 %v446
        %v671 = vpack.c.b16 %v662, %v659
        %v672 = vpack.c.b16 %v663, %v660
        %v673 = vpack.c.b16 %v664, %v661
        %v674 = vpack.c.b16 %v668, %v665
        %v675 = vpack.c.b16 %v669, %v666
        %v676 = vpack.c.b16 %v670, %v667
        %677 = vrot.lane.b32.xlu0 %v671, 127
        %v678 = vpop.permute.xlu0 %677
        %679 = vrot.lane.b32.xlu0 %v672, 127
        %v680 = vpop.permute.xlu0 %679
        %681 = vrot.lane.b32.xlu0 %v673, 127
        %v682 = vpop.permute.xlu0 %681
        %683 = vrot.lane.b32.xlu0 %v674, 127
        %v684 = vpop.permute.xlu0 %683
        %685 = vrot.lane.b32.xlu0 %v675, 127
        %v686 = vpop.permute.xlu0 %685
        %687 = vrot.lane.b32.xlu0 %v676, 127
        %v688 = vpop.permute.xlu0 %687
        %v689 = vsel %vm492, %v678, %v680
        %v690 = vsel %vm492, %v680, %v682
        %v691 = vsel %vm492, %v684, %v686
        %v692 = vsel %vm492, %v686, %v688
        %v701 = vunpack.c.l.b16 %v481
        %v702 = vunpack.c.h.b16 %v481
        %v703 = vunpack.c.l.b16 %v482
        %v704 = vunpack.c.l.b16 %v483
        %v705 = vunpack.c.h.b16 %v483
        %v706 = vunpack.c.l.b16 %v484
        %v707 = vunpack.c.l.b16 %v485
        %v708 = vunpack.c.h.b16 %v485
        %v709 = vunpack.c.l.b16 %v486
        %v710 = vunpack.c.l.b16 %v487
        %v711 = vunpack.c.h.b16 %v487
        %v712 = vunpack.c.l.b16 %v488
        %v713 = vpack.c.b16 %v704, %v701
        %v714 = vpack.c.b16 %v705, %v702
        %v715 = vpack.c.b16 %v706, %v703
        %v716 = vpack.c.b16 %v710, %v707
        %v717 = vpack.c.b16 %v711, %v708
        %v718 = vpack.c.b16 %v712, %v709
        %719 = vrot.lane.b32.xlu0 %v713, 126
        %v720 = vpop.permute.xlu0 %719
        %721 = vrot.lane.b32.xlu0 %v714, 126
        %v722 = vpop.permute.xlu0 %721
        %723 = vrot.lane.b32.xlu0 %v715, 126
        %v724 = vpop.permute.xlu0 %723
        %725 = vrot.lane.b32.xlu0 %v716, 126
        %v726 = vpop.permute.xlu0 %725
        %727 = vrot.lane.b32.xlu0 %v717, 126
        %v728 = vpop.permute.xlu0 %727
        %729 = vrot.lane.b32.xlu0 %v718, 126
        %v730 = vpop.permute.xlu0 %729
        %vm731 = vcmask 1031168
        %v732 = vsel %vm731, %v720, %v722
        %v733 = vsel %vm731, %v722, %v724
        %v734 = vsel %vm731, %v726, %v728
        %v735 = vsel %vm731, %v728, %v730
        %v744 = vunpack.c.l.b16 %v496
        %v745 = vunpack.c.h.b16 %v496
        %v746 = vunpack.c.l.b16 %v497
        %v747 = vunpack.c.l.b16 %v498
        %v748 = vunpack.c.h.b16 %v498
        %v749 = vunpack.c.l.b16 %v499
        %v750 = vunpack.c.l.b16 %v500
        %v751 = vunpack.c.h.b16 %v500
        %v752 = vunpack.c.l.b16 %v501
        %v753 = vunpack.c.l.b16 %v502
        %v754 = vunpack.c.h.b16 %v502
        %v755 = vunpack.c.l.b16 %v503
        %v756 = vpack.c.b16 %v747, %v744
        %v757 = vpack.c.b16 %v748, %v745
        %v758 = vpack.c.b16 %v749, %v746
        %v759 = vpack.c.b16 %v753, %v750
        %v760 = vpack.c.b16 %v754, %v751
        %v761 = vpack.c.b16 %v755, %v752
        %762 = vrot.lane.b32.xlu0 %v756, 112
        %v763 = vpop.permute.xlu0 %762
        %764 = vrot.lane.b32.xlu0 %v757, 112
        %v765 = vpop.permute.xlu0 %764
        %766 = vrot.lane.b32.xlu0 %v758, 112
        %v767 = vpop.permute.xlu0 %766
        %768 = vrot.lane.b32.xlu0 %v759, 112
        %v769 = vpop.permute.xlu0 %768
        %770 = vrot.lane.b32.xlu0 %v760, 112
        %v771 = vpop.permute.xlu0 %770
        %772 = vrot.lane.b32.xlu0 %v761, 112
        %v773 = vpop.permute.xlu0 %772
        %vm774 = vcmask 916480
        %v775 = vsel %vm774, %v763, %v765
        %v776 = vsel %vm774, %v765, %v767
        %v777 = vsel %vm774, %v769, %v771
        %v778 = vsel %vm774, %v771, %v773
        %779 = vrot.lane.b32.xlu0 %v672, 111
        %v780 = vpop.permute.xlu0 %779
        %781 = vrot.lane.b32.xlu0 %v673, 111
        %v782 = vpop.permute.xlu0 %781
        %783 = vrot.lane.b32.xlu0 %v675, 111
        %v784 = vpop.permute.xlu0 %783
        %785 = vrot.lane.b32.xlu0 %v676, 111
        %v786 = vpop.permute.xlu0 %785
        %v787 = vsel %vm456, %v780, %v782
        %v788 = vsel %vm456, %v784, %v786
        %v793 = vunpack.c.l.b16 %v549
        %v794 = vunpack.c.h.b16 %v549
        %v795 = vunpack.c.l.b16 %v550
        %v796 = vunpack.c.h.b16 %v550
        %v797 = vunpack.c.l.b16 %v551
        %v798 = vunpack.c.h.b16 %v551
        %v799 = vunpack.c.l.b16 %v552
        %v800 = vunpack.c.h.b16 %v552
        %v801 = vpack.c.b16 %v795, %v793
        %v802 = vpack.c.b16 %v796, %v794
        %v803 = vpack.c.b16 %v799, %v797
        %v804 = vpack.c.b16 %v800, %v798
        %805 = vrot.lane.b32.xlu0 %v801, 111
        %v806 = vpop.permute.xlu0 %805
        %807 = vrot.lane.b32.xlu0 %v802, 111
        %v808 = vpop.permute.xlu0 %807
        %809 = vrot.lane.b32.xlu0 %v803, 111
        %v810 = vpop.permute.xlu0 %809
        %811 = vrot.lane.b32.xlu0 %v804, 111
        %v812 = vpop.permute.xlu0 %811
        %v813 = vsel %vm456, %v806, %v808
        %v814 = vsel %vm456, %v810, %v812
        %v819 = vunpack.c.l.b16 %v589
        %v820 = vunpack.c.h.b16 %v589
        %v821 = vunpack.c.l.b16 %v590
        %v822 = vunpack.c.h.b16 %v590
        %v823 = vunpack.c.l.b16 %v591
        %v824 = vunpack.c.h.b16 %v591
        %v825 = vunpack.c.l.b16 %v592
        %v826 = vunpack.c.h.b16 %v592
        %v827 = vpack.c.b16 %v821, %v819
        %v828 = vpack.c.b16 %v822, %v820
        %v829 = vpack.c.b16 %v825, %v823
        %v830 = vpack.c.b16 %v826, %v824
        %831 = vrot.lane.b32.xlu0 %v827, 111
        %v832 = vpop.permute.xlu0 %831
        %833 = vrot.lane.b32.xlu0 %v828, 111
        %v834 = vpop.permute.xlu0 %833
        %835 = vrot.lane.b32.xlu0 %v829, 111
        %v836 = vpop.permute.xlu0 %835
        %837 = vrot.lane.b32.xlu0 %v830, 111
        %v838 = vpop.permute.xlu0 %837
        %v839 = vsel %vm456, %v832, %v834
        %v840 = vsel %vm456, %v836, %v838
        %v841 = vunpack.c.h.b16 %v440
        %v842 = vunpack.c.h.b16 %v442
        %v843 = vunpack.c.h.b16 %v444
        %v844 = vunpack.c.h.b16 %v446
        %v845 = vpack.c.b16 %v842, %v841
        %v846 = vpack.c.b16 %v844, %v843
        %847 = vrot.lane.b32.xlu0 %v672, 95
        %v848 = vpop.permute.xlu0 %847
        %849 = vrot.lane.b32.xlu0 %v673, 95
        %v850 = vpop.permute.xlu0 %849
        %851 = vrot.lane.b32.xlu0 %v845, 95
        %v852 = vpop.permute.xlu0 %851
        %853 = vrot.lane.b32.xlu0 %v675, 95
        %v854 = vpop.permute.xlu0 %853
        %855 = vrot.lane.b32.xlu0 %v676, 95
        %v856 = vpop.permute.xlu0 %855
        %857 = vrot.lane.b32.xlu0 %v846, 95
        %v858 = vpop.permute.xlu0 %857
        %vm859 = vcmask 777216
        %v860 = vsel %vm859, %v848, %v850
        %v861 = vsel %vm859, %v850, %v852
        %v862 = vsel %vm859, %v854, %v856
        %v863 = vsel %vm859, %v856, %v858
        %v868 = vunpack.c.l.b16 %v629
        %v869 = vunpack.c.h.b16 %v629
        %v870 = vunpack.c.l.b16 %v630
        %v871 = vunpack.c.h.b16 %v630
        %v872 = vunpack.c.l.b16 %v631
        %v873 = vunpack.c.h.b16 %v631
        %v874 = vunpack.c.l.b16 %v632
        %v875 = vunpack.c.h.b16 %v632
        %v876 = vpack.c.b16 %v870, %v868
        %v877 = vpack.c.b16 %v871, %v869
        %v878 = vpack.c.b16 %v874, %v872
        %v879 = vpack.c.b16 %v875, %v873
        %880 = vrot.lane.b32.xlu0 %v876, 111
        %v881 = vpop.permute.xlu0 %880
        %882 = vrot.lane.b32.xlu0 %v877, 111
        %v883 = vpop.permute.xlu0 %882
        %884 = vrot.lane.b32.xlu0 %v878, 111
        %v885 = vpop.permute.xlu0 %884
        %886 = vrot.lane.b32.xlu0 %v879, 111
        %v887 = vpop.permute.xlu0 %886
        %v888 = vsel %vm456, %v881, %v883
        %v889 = vsel %vm456, %v885, %v887
        %v890 = vld [vmem:[#allocation3] sm:$0xff]
        %v891 = vld [vmem:[#allocation3 + $0x8] sm:$0xf]
        %v892 = vld [vmem:[#allocation3 + $0xc] sm:$0xff]
        %v893 = vld [vmem:[#allocation3 + $0x14] sm:$0xf]
        %v894 = vld [vmem:[#allocation3 + $0x18] sm:$0xff]
        %v895 = vld [vmem:[#allocation3 + $0x20] sm:$0xf]
        %v896 = vld [vmem:[#allocation3 + $0x24] sm:$0xff]
        %v897 = vld [vmem:[#allocation3 + $0x2c] sm:$0xf]
        %v898 = vld [vmem:[%s2] sm:$0xff]
        %v899 = vld [vmem:[%s2 + $0x8] sm:$0xff]
        %v900 = vld [vmem:[%s2 + $0x10] sm:$0xff]
        %v901 = vld [vmem:[%s2 + $0x18] sm:$0xff]
        %903 = vset.pattern.permute.xlu0 0
        %904 = vperm.xlu0 %903, %v898
        %v905 = vpop.permute.xlu0 %904
        %908 = vset.pattern.permute.xlu0 0
        %909 = vperm.xlu0 %908, %v899
        %v910 = vpop.permute.xlu0 %909
        %913 = vset.pattern.permute.xlu0 0
        %914 = vperm.xlu0 %913, %v900
        %v915 = vpop.permute.xlu0 %914
        %918 = vset.pattern.permute.xlu0 0
        %919 = vperm.xlu0 %918, %v901
        %v920 = vpop.permute.xlu0 %919
        %v930 = vunpack.c.l.b16 %v890
        %v931 = vunpack.c.h.b16 %v890
        %v932 = vunpack.c.l.b16 %v891
        %v933 = vunpack.c.l.b16 %v892
        %v934 = vunpack.c.h.b16 %v892
        %v935 = vunpack.c.l.b16 %v893
        %v936 = vunpack.c.l.b16 %v894
        %v937 = vunpack.c.h.b16 %v894
        %v938 = vunpack.c.l.b16 %v895
        %v939 = vunpack.c.l.b16 %v896
        %v940 = vunpack.c.h.b16 %v896
        %v941 = vunpack.c.l.b16 %v897
        %v942 = vpack.c.b16 %v933, %v930
        %v943 = vpack.c.b16 %v934, %v931
        %v944 = vpack.c.b16 %v935, %v932
        %v945 = vpack.c.b16 %v939, %v936
        %v946 = vpack.c.b16 %v940, %v937
        %v947 = vpack.c.b16 %v941, %v938
        %952 = vrot.lane.b32.xlu0 %v653, 17
        %v953 = vpop.permute.xlu0 %952
        %954 = vrot.lane.b32.xlu0 %v654, 17
        %v955 = vpop.permute.xlu0 %954
        %956 = vrot.lane.b32.xlu0 %v655, 17
        %v957 = vpop.permute.xlu0 %956
        %958 = vrot.lane.b32.xlu0 %v656, 17
        %v959 = vpop.permute.xlu0 %958
        %960 = vrot.lane.b32.xlu0 %v657, 17
        %v961 = vpop.permute.xlu0 %960
        %962 = vrot.lane.b32.xlu0 %v658, 17
        %v963 = vpop.permute.xlu0 %962
        %964 = vrot.lane.b32.xlu0 %v689, 17
        %v965 = vpop.permute.xlu0 %964
        %966 = vrot.lane.b32.xlu0 %v690, 17
        %v967 = vpop.permute.xlu0 %966
        %968 = vrot.lane.b32.xlu0 %v682, 17
        %v969 = vpop.permute.xlu0 %968
        %970 = vrot.lane.b32.xlu0 %v691, 17
        %v971 = vpop.permute.xlu0 %970
        %972 = vrot.lane.b32.xlu0 %v692, 17
        %v973 = vpop.permute.xlu0 %972
        %974 = vrot.lane.b32.xlu0 %v688, 17
        %v975 = vpop.permute.xlu0 %974
        %976 = vrot.lane.b32.xlu0 %v732, 17
        %v977 = vpop.permute.xlu0 %976
        %978 = vrot.lane.b32.xlu0 %v733, 17
        %v979 = vpop.permute.xlu0 %978
        %980 = vrot.lane.b32.xlu0 %v724, 17
        %v981 = vpop.permute.xlu0 %980
        %982 = vrot.lane.b32.xlu0 %v734, 17
        %v983 = vpop.permute.xlu0 %982
        %984 = vrot.lane.b32.xlu0 %v735, 17
        %v985 = vpop.permute.xlu0 %984
        %986 = vrot.lane.b32.xlu0 %v730, 17
        %v987 = vpop.permute.xlu0 %986
        %988 = vrot.lane.b32.xlu0 %v775, 17
        %v989 = vpop.permute.xlu0 %988
        %990 = vrot.lane.b32.xlu0 %v776, 17
        %v991 = vpop.permute.xlu0 %990
        %992 = vrot.lane.b32.xlu0 %v767, 17
        %v993 = vpop.permute.xlu0 %992
        %994 = vrot.lane.b32.xlu0 %v777, 17
        %v995 = vpop.permute.xlu0 %994
        %996 = vrot.lane.b32.xlu0 %v778, 17
        %v997 = vpop.permute.xlu0 %996
        %998 = vrot.lane.b32.xlu0 %v773, 17
        %v999 = vpop.permute.xlu0 %998
        %1000 = vrot.lane.b32.xlu0 %v780, 17
        %v1001 = vpop.permute.xlu0 %1000
        %1002 = vrot.lane.b32.xlu0 %v787, 17
        %v1003 = vpop.permute.xlu0 %1002
        %1004 = vrot.lane.b32.xlu0 %v782, 17
        %v1005 = vpop.permute.xlu0 %1004
        %1006 = vrot.lane.b32.xlu0 %v784, 17
        %v1007 = vpop.permute.xlu0 %1006
        %1008 = vrot.lane.b32.xlu0 %v788, 17
        %v1009 = vpop.permute.xlu0 %1008
        %1010 = vrot.lane.b32.xlu0 %v786, 17
        %v1011 = vpop.permute.xlu0 %1010
        %1012 = vrot.lane.b32.xlu0 %v806, 17
        %v1013 = vpop.permute.xlu0 %1012
        %1014 = vrot.lane.b32.xlu0 %v813, 17
        %v1015 = vpop.permute.xlu0 %1014
        %1016 = vrot.lane.b32.xlu0 %v808, 17
        %v1017 = vpop.permute.xlu0 %1016
        %1018 = vrot.lane.b32.xlu0 %v810, 17
        %v1019 = vpop.permute.xlu0 %1018
        %1020 = vrot.lane.b32.xlu0 %v814, 17
        %v1021 = vpop.permute.xlu0 %1020
        %1022 = vrot.lane.b32.xlu0 %v812, 17
        %v1023 = vpop.permute.xlu0 %1022
        %1024 = vrot.lane.b32.xlu0 %v832, 17
        %v1025 = vpop.permute.xlu0 %1024
        %1026 = vrot.lane.b32.xlu0 %v839, 17
        %v1027 = vpop.permute.xlu0 %1026
        %1028 = vrot.lane.b32.xlu0 %v834, 17
        %v1029 = vpop.permute.xlu0 %1028
        %1030 = vrot.lane.b32.xlu0 %v836, 17
        %v1031 = vpop.permute.xlu0 %1030
        %1032 = vrot.lane.b32.xlu0 %v840, 17
        %v1033 = vpop.permute.xlu0 %1032
        %1034 = vrot.lane.b32.xlu0 %v838, 17
        %v1035 = vpop.permute.xlu0 %1034
        %1036 = vrot.lane.b32.xlu0 %v848, 17
        %v1037 = vpop.permute.xlu0 %1036
        %1038 = vrot.lane.b32.xlu0 %v860, 17
        %v1039 = vpop.permute.xlu0 %1038
        %1040 = vrot.lane.b32.xlu0 %v861, 17
        %v1041 = vpop.permute.xlu0 %1040
        %1042 = vrot.lane.b32.xlu0 %v854, 17
        %v1043 = vpop.permute.xlu0 %1042
        %1044 = vrot.lane.b32.xlu0 %v862, 17
        %v1045 = vpop.permute.xlu0 %1044
        %1046 = vrot.lane.b32.xlu0 %v863, 17
        %v1047 = vpop.permute.xlu0 %1046
        %1048 = vrot.lane.b32.xlu0 %v881, 17
        %v1049 = vpop.permute.xlu0 %1048
        %1050 = vrot.lane.b32.xlu0 %v888, 17
        %v1051 = vpop.permute.xlu0 %1050
        %1052 = vrot.lane.b32.xlu0 %v883, 17
        %v1053 = vpop.permute.xlu0 %1052
        %1054 = vrot.lane.b32.xlu0 %v885, 17
        %v1055 = vpop.permute.xlu0 %1054
        %1056 = vrot.lane.b32.xlu0 %v889, 17
        %v1057 = vpop.permute.xlu0 %1056
        %1058 = vrot.lane.b32.xlu0 %v887, 17
        %v1059 = vpop.permute.xlu0 %1058
        %vm1060 = vcmask 138240
        %v1061 = vsel %vm1060, %v953, %v955
        %v1062 = vsel %vm1060, %v955, %v957
        %v1063 = vsel %vm1060, %v959, %v961
        %v1064 = vsel %vm1060, %v961, %v963
        %v1065 = vsel %vm1060, %v965, %v967
        %v1066 = vsel %vm1060, %v967, %v969
        %v1067 = vsel %vm1060, %v971, %v973
        %v1068 = vsel %vm1060, %v973, %v975
        %v1069 = vsel %vm1060, %v977, %v979
        %v1070 = vsel %vm1060, %v979, %v981
        %v1071 = vsel %vm1060, %v983, %v985
        %v1072 = vsel %vm1060, %v985, %v987
        %v1073 = vsel %vm1060, %v989, %v991
        %v1074 = vsel %vm1060, %v991, %v993
        %v1075 = vsel %vm1060, %v995, %v997
        %v1076 = vsel %vm1060, %v997, %v999
        %v1077 = vsel %vm1060, %v1001, %v1003
        %v1078 = vsel %vm1060, %v1003, %v1005
        %v1079 = vsel %vm1060, %v1007, %v1009
        %v1080 = vsel %vm1060, %v1009, %v1011
        %v1081 = vsel %vm1060, %v1013, %v1015
        %v1082 = vsel %vm1060, %v1015, %v1017
        %v1083 = vsel %vm1060, %v1019, %v1021
        %v1084 = vsel %vm1060, %v1021, %v1023
        %v1085 = vsel %vm1060, %v1025, %v1027
        %v1086 = vsel %vm1060, %v1027, %v1029
        %v1087 = vsel %vm1060, %v1031, %v1033
        %v1088 = vsel %vm1060, %v1033, %v1035
        %v1089 = vsel %vm1060, %v1037, %v1039
        %v1090 = vsel %vm1060, %v1039, %v1041
        %v1091 = vsel %vm1060, %v1043, %v1045
        %v1092 = vsel %vm1060, %v1045, %v1047
        %v1093 = vsel %vm1060, %v1049, %v1051
        %v1094 = vsel %vm1060, %v1051, %v1053
        %v1095 = vsel %vm1060, %v1055, %v1057
        %v1096 = vsel %vm1060, %v1057, %v1059
        %vm1133 = vcmask 261120
        %v1135 = vsel %vm1133, %v944, 0
        %v1138 = vsel %vm1133, %v947, 0
        %1140 = vmatprep.subr.bf16.mxu0 %v1076
        %1141 = vmatpush1.bf16.msra.mxu0 %v1075
        %1142 = vmatprep.subr.bf16.mxu0 %v1074
        %1143 = vmatpush1.bf16.msra.mxu0 %v1073
        %1144 = vmatprep.subr.bf16.mxu0 %v1072
        %1145 = vmatpush1.bf16.msra.mxu0 %v1071
        %1146 = vmatprep.subr.bf16.mxu0 %v1070
        %1147 = vmatpush1.bf16.msra.mxu0 %v1069
        %1148 = vmatprep.subr.bf16.mxu0 %v1068
        %1149 = vmatpush1.bf16.msra.mxu0 %v1067
        %1150 = vmatprep.subr.bf16.mxu0 %v1066
        %1151 = vmatpush1.bf16.msra.mxu0 %v1065
        %1152 = vmatprep.subr.bf16.mxu0 %v1064
        %1153 = vmatpush1.bf16.msra.mxu0 %v1063
        %1154 = vmatprep.subr.bf16.mxu0 %v1062
        %1155 = vmatpush1.bf16.msra.mxu0 %v1061
        %1156 = vmatprep.subr.bf16.mxu0 %v1092
        %1157 = vmatpush2.bf16.msra.mxu0 %v1091
        %1158 = vmatprep.subr.bf16.mxu0 %v1090
        %1159 = vmatpush2.bf16.msra.mxu0 %v1089
        %1160 = vmatprep.subr.bf16.mxu0 %v1088
        %1161 = vmatpush2.bf16.msra.mxu0 %v1087
        %1162 = vmatprep.subr.bf16.mxu0 %v1086
        %1163 = vmatpush2.bf16.msra.mxu0 %v1085
        %1164 = vmatprep.subr.bf16.mxu0 %v1084
        %1165 = vmatpush2.bf16.msra.mxu0 %v1083
        %1166 = vmatprep.subr.bf16.mxu0 %v1082
        %1167 = vmatpush2.bf16.msra.mxu0 %v1081
        %1168 = vmatprep.subr.bf16.mxu0 %v1080
        %1169 = vmatpush2.bf16.msra.mxu0 %v1079
        %1170 = vmatprep.subr.bf16.mxu0 %v1078
        %1171 = vmatpush2.bf16.msra.mxu0 %v1077
        %1172 = vmatprep.mubr.bf16.mxu0 %v943
        %1173 = vmatmul.mubr.bf16.gmra.mxu0 %v942
        %v1174 = vpop.f32.mrf.mxu0
        %v1175 = vadd.f32 %v905, %v1174
        %v1176 = vpop.f32.mrf.mxu0
        %v1177 = vadd.f32 %v905, %v1176
        %v1178 = vpop.f32.mrf.mxu0
        %v1179 = vadd.f32 %v910, %v1178
        %v1180 = vpop.f32.mrf.mxu0
        %v1181 = vadd.f32 %v910, %v1180
        %1182 = vmatprep.mubr.bf16.mxu0 %v946
        %1183 = vmatmul.mubr.bf16.gmra.mxu0 %v945
        %v1184 = vpop.f32.mrf.mxu0
        %v1185 = vadd.f32 %v915, %v1184
        %v1186 = vpop.f32.mrf.mxu0
        %v1187 = vadd.f32 %v915, %v1186
        %v1188 = vpop.f32.mrf.mxu0
        %v1189 = vadd.f32 %v920, %v1188
        %v1190 = vpop.f32.mrf.mxu0
        %v1191 = vadd.f32 %v920, %v1190
        %1192 = vdwg.mxu0
        %1193 = vmatprep.subr.bf16.mxu0 0
        %1194 = vmatpush1.bf16.msra.mxu0 0
        %1195 = vmatprep.subr.bf16.mxu0 0
        %1196 = vmatpush1.bf16.msra.mxu0 0
        %1197 = vmatprep.subr.bf16.mxu0 0
        %1198 = vmatpush1.bf16.msra.mxu0 0
        %1199 = vmatprep.subr.bf16.mxu0 0
        %1200 = vmatpush1.bf16.msra.mxu0 0
        %1201 = vmatprep.subr.bf16.mxu0 0
        %1202 = vmatpush1.bf16.msra.mxu0 0
        %1203 = vmatprep.subr.bf16.mxu0 0
        %1204 = vmatpush1.bf16.msra.mxu0 0
        %1205 = vmatprep.subr.bf16.mxu0 %v1096
        %1206 = vmatpush1.bf16.msra.mxu0 %v1095
        %1207 = vmatprep.subr.bf16.mxu0 %v1094
        %1208 = vmatpush1.bf16.msra.mxu0 %v1093
        %1209 = vmatprep.subr.bf16.mxu0 0
        %1210 = vmatpush2.bf16.msra.mxu0 0
        %1211 = vmatprep.subr.bf16.mxu0 0
        %1212 = vmatpush2.bf16.msra.mxu0 0
        %1213 = vmatprep.subr.bf16.mxu0 0
        %1214 = vmatpush2.bf16.msra.mxu0 0
        %1215 = vmatprep.subr.bf16.mxu0 0
        %1216 = vmatpush2.bf16.msra.mxu0 0
        %1217 = vmatprep.subr.bf16.mxu0 0
        %1218 = vmatpush2.bf16.msra.mxu0 0
        %1219 = vmatprep.subr.bf16.mxu0 0
        %1220 = vmatpush2.bf16.msra.mxu0 0
        %1221 = vmatprep.subr.bf16.mxu0 0
        %1222 = vmatpush2.bf16.msra.mxu0 0
        %1223 = vmatprep.subr.bf16.mxu0 0
        %1224 = vmatpush2.bf16.msra.mxu0 0
        %1225 = vmatprep.mubr.bf16.mxu0 0
        %1226 = vmatmul.mubr.bf16.gmra.mxu0 %v1135
        %v1227 = vpop.f32.mrf.mxu0
        %v1228 = vadd.f32 %v1175, %v1227
        %v1229 = vpop.f32.mrf.mxu0
        %v1230 = vadd.f32 %v1177, %v1229
        %v1231 = vpop.f32.mrf.mxu0
        %v1232 = vadd.f32 %v1179, %v1231
        %v1233 = vpop.f32.mrf.mxu0
        %v1234 = vadd.f32 %v1181, %v1233
        %1235 = vmatprep.mubr.bf16.mxu0 0
        %1236 = vmatmul.mubr.bf16.gmra.mxu0 %v1138
        %v1237 = vpop.f32.mrf.mxu0
        %v1238 = vadd.f32 %v1185, %v1237
        %v1239 = vpop.f32.mrf.mxu0
        %v1240 = vadd.f32 %v1187, %v1239
        %v1241 = vpop.f32.mrf.mxu0
        %v1242 = vadd.f32 %v1189, %v1241
        %v1243 = vpop.f32.mrf.mxu0
        %v1244 = vadd.f32 %v1191, %v1243
        %1245 = vdwg.mxu0
        %v1246 = vmax.f32 %v1228, 0.0
        %v1247 = vmax.f32 %v1230, 0.0
        %v1248 = vmax.f32 %v1232, 0.0
        %v1249 = vmax.f32 %v1234, 0.0
        %v1250 = vmax.f32 %v1238, 0.0
        %v1251 = vmax.f32 %v1240, 0.0
        %v1252 = vmax.f32 %v1242, 0.0
        %v1253 = vmax.f32 %v1244, 0.0
        %v1254 = vpack.c.bf16 %v1248, %v1246
        %v1255 = vpack.c.bf16 %v1249, %v1247
        %v1256 = vpack.c.bf16 %v1252, %v1250
        %v1257 = vpack.c.bf16 %v1253, %v1251
        %v1262 = vunpack.c.l.b16 %v1254
        %v1263 = vunpack.c.l.b16 %v1255
        %v1264 = vunpack.c.h.b16 %v1254
        %v1265 = vunpack.c.h.b16 %v1255
        %v1266 = vunpack.c.l.b16 %v1256
        %v1267 = vunpack.c.l.b16 %v1257
        %v1268 = vunpack.c.h.b16 %v1256
        %v1269 = vunpack.c.h.b16 %v1257
        %v1270 = vpack.c.b16 %v1263, %v1262
        %v1271 = vpack.c.b16 %v1265, %v1264
        %v1272 = vpack.c.b16 %v1267, %v1266
        %v1273 = vpack.c.b16 %v1269, %v1268
        %1278 = vst [vmem:[#allocation2 + $0x4] sm:$0xff] %v1270
        %1279 = vst [vmem:[#allocation2 + $0x14] sm:$0xff] %v1271
        %1280 = vst [vmem:[#allocation2 + $0x24] sm:$0xff] %v1272
        %1281 = vst [vmem:[#allocation2 + $0x34] sm:$0xff] %v1273
        %v1282 = vld [vmem:[#allocation2] sm:$0xff]
        %v1283 = vld [vmem:[#allocation2 + $0x8] sm:$0xff]
        %v1284 = vld [vmem:[#allocation2 + $0x10] sm:$0xff]
        %v1285 = vld [vmem:[#allocation2 + $0x18] sm:$0xff]
        %v1286 = vld [vmem:[#allocation2 + $0x20] sm:$0xff]
        %v1287 = vld [vmem:[#allocation2 + $0x28] sm:$0xff]
        %v1288 = vld [vmem:[#allocation2 + $0x30] sm:$0xff]
        %v1289 = vld [vmem:[#allocation2 + $0x38] sm:$0xff]
        %v1290 = vsel %vm458, %v1282, 0
        %v1291 = vsel %vm459, %v1283, 0
        %v1292 = vsel %vm458, %v1284, 0
        %v1293 = vsel %vm459, %v1285, 0
        %v1294 = vsel %vm458, %v1286, 0
        %v1295 = vsel %vm459, %v1287, 0
        %v1296 = vsel %vm458, %v1288, 0
        %v1297 = vsel %vm459, %v1289, 0
        %v1298 = vsel %vm479, %v1282, 0
        %v1299 = vsel %vm480, %v1283, 0
        %v1300 = vsel %vm479, %v1284, 0
        %v1301 = vsel %vm480, %v1285, 0
        %v1302 = vsel %vm479, %v1286, 0
        %v1303 = vsel %vm480, %v1287, 0
        %v1304 = vsel %vm479, %v1288, 0
        %v1305 = vsel %vm480, %v1289, 0
        %v1306 = vsel %vm494, %v1282, 0
        %v1307 = vsel %vm495, %v1283, 0
        %v1308 = vsel %vm494, %v1284, 0
        %v1309 = vsel %vm495, %v1285, 0
        %v1310 = vsel %vm494, %v1286, 0
        %v1311 = vsel %vm495, %v1287, 0
        %v1312 = vsel %vm494, %v1288, 0
        %v1313 = vsel %vm495, %v1289, 0
        %1322 = vrot.lane.b32.xlu0 %v1282, 127
        %v1323 = vpop.permute.xlu0 %1322
        %1324 = vrot.lane.b32.xlu0 %v1283, 127
        %v1325 = vpop.permute.xlu0 %1324
        %1326 = vrot.lane.b32.xlu0 %v1284, 127
        %v1327 = vpop.permute.xlu0 %1326
        %1328 = vrot.lane.b32.xlu0 %v1285, 127
        %v1329 = vpop.permute.xlu0 %1328
        %1330 = vrot.lane.b32.xlu0 %v1286, 127
        %v1331 = vpop.permute.xlu0 %1330
        %1332 = vrot.lane.b32.xlu0 %v1287, 127
        %v1333 = vpop.permute.xlu0 %1332
        %1334 = vrot.lane.b32.xlu0 %v1288, 127
        %v1335 = vpop.permute.xlu0 %1334
        %1336 = vrot.lane.b32.xlu0 %v1289, 127
        %v1337 = vpop.permute.xlu0 %1336
        %v1338 = vrot.slane %v1323, 4
        %v1339 = vrot.slane %v1325, 4
        %v1340 = vrot.slane %v1327, 4
        %v1341 = vrot.slane %v1329, 4
        %v1342 = vrot.slane %v1331, 4
        %v1343 = vrot.slane %v1333, 4
        %v1344 = vrot.slane %v1335, 4
        %v1345 = vrot.slane %v1337, 4
        %v1346 = vsel %vm536, %v1338, %v1339
        %v1347 = vsel %vm492, %v1346, %v1325
        %v1348 = vsel %vm536, %v1340, %v1341
        %v1349 = vsel %vm492, %v1348, %v1329
        %v1350 = vsel %vm536, %v1342, %v1343
        %v1351 = vsel %vm492, %v1350, %v1333
        %v1352 = vsel %vm536, %v1344, %v1345
        %v1353 = vsel %vm492, %v1352, %v1337
        %v1358 = vsel %vm472, %v1347, 0
        %v1359 = vsel %vm472, %v1349, 0
        %v1360 = vsel %vm472, %v1351, 0
        %v1361 = vsel %vm472, %v1353, 0
        %1362 = vrot.lane.b32.xlu0 %v1282, 113
        %v1363 = vpop.permute.xlu0 %1362
        %1364 = vrot.lane.b32.xlu0 %v1283, 113
        %v1365 = vpop.permute.xlu0 %1364
        %1366 = vrot.lane.b32.xlu0 %v1284, 113
        %v1367 = vpop.permute.xlu0 %1366
        %1368 = vrot.lane.b32.xlu0 %v1285, 113
        %v1369 = vpop.permute.xlu0 %1368
        %1370 = vrot.lane.b32.xlu0 %v1286, 113
        %v1371 = vpop.permute.xlu0 %1370
        %1372 = vrot.lane.b32.xlu0 %v1287, 113
        %v1373 = vpop.permute.xlu0 %1372
        %1374 = vrot.lane.b32.xlu0 %v1288, 113
        %v1375 = vpop.permute.xlu0 %1374
        %1376 = vrot.lane.b32.xlu0 %v1289, 113
        %v1377 = vpop.permute.xlu0 %1376
        %v1378 = vrot.slane %v1363, 4
        %v1379 = vrot.slane %v1365, 4
        %v1380 = vrot.slane %v1367, 4
        %v1381 = vrot.slane %v1369, 4
        %v1382 = vrot.slane %v1371, 4
        %v1383 = vrot.slane %v1373, 4
        %v1384 = vrot.slane %v1375, 4
        %v1385 = vrot.slane %v1377, 4
        %v1386 = vsel %vm536, %v1378, %v1379
        %v1387 = vsel %vm477, %v1386, %v1365
        %v1388 = vsel %vm536, %v1380, %v1381
        %v1389 = vsel %vm477, %v1388, %v1369
        %v1390 = vsel %vm536, %v1382, %v1383
        %v1391 = vsel %vm477, %v1390, %v1373
        %v1392 = vsel %vm536, %v1384, %v1385
        %v1393 = vsel %vm477, %v1392, %v1377
        %v1398 = vsel %vm451, %v1387, 0
        %v1399 = vsel %vm451, %v1389, 0
        %v1400 = vsel %vm451, %v1391, 0
        %v1401 = vsel %vm451, %v1393, 0
        %1402 = vrot.lane.b32.xlu0 %v1282, 111
        %v1403 = vpop.permute.xlu0 %1402
        %1404 = vrot.lane.b32.xlu0 %v1283, 111
        %v1405 = vpop.permute.xlu0 %1404
        %1406 = vrot.lane.b32.xlu0 %v1284, 111
        %v1407 = vpop.permute.xlu0 %1406
        %1408 = vrot.lane.b32.xlu0 %v1285, 111
        %v1409 = vpop.permute.xlu0 %1408
        %1410 = vrot.lane.b32.xlu0 %v1286, 111
        %v1411 = vpop.permute.xlu0 %1410
        %1412 = vrot.lane.b32.xlu0 %v1287, 111
        %v1413 = vpop.permute.xlu0 %1412
        %1414 = vrot.lane.b32.xlu0 %v1288, 111
        %v1415 = vpop.permute.xlu0 %1414
        %1416 = vrot.lane.b32.xlu0 %v1289, 111
        %v1417 = vpop.permute.xlu0 %1416
        %v1418 = vrot.slane %v1403, 4
        %v1419 = vrot.slane %v1405, 4
        %v1420 = vrot.slane %v1407, 4
        %v1421 = vrot.slane %v1409, 4
        %v1422 = vrot.slane %v1411, 4
        %v1423 = vrot.slane %v1413, 4
        %v1424 = vrot.slane %v1415, 4
        %v1425 = vrot.slane %v1417, 4
        %v1426 = vsel %vm536, %v1418, %v1419
        %v1427 = vsel %vm456, %v1426, %v1405
        %v1428 = vsel %vm536, %v1420, %v1421
        %v1429 = vsel %vm456, %v1428, %v1409
        %v1430 = vsel %vm536, %v1422, %v1423
        %v1431 = vsel %vm456, %v1430, %v1413
        %v1432 = vsel %vm536, %v1424, %v1425
        %v1433 = vsel %vm456, %v1432, %v1417
        %v1438 = vsel %vm472, %v1427, 0
        %v1439 = vsel %vm472, %v1429, 0
        %v1440 = vsel %vm472, %v1431, 0
        %v1441 = vsel %vm472, %v1433, 0
        %v1450 = vunpack.c.l.b16 %v1290
        %v1451 = vunpack.c.h.b16 %v1290
        %v1452 = vunpack.c.l.b16 %v1291
        %v1453 = vunpack.c.l.b16 %v1292
        %v1454 = vunpack.c.h.b16 %v1292
        %v1455 = vunpack.c.l.b16 %v1293
        %v1456 = vunpack.c.l.b16 %v1294
        %v1457 = vunpack.c.h.b16 %v1294
        %v1458 = vunpack.c.l.b16 %v1295
        %v1459 = vunpack.c.l.b16 %v1296
        %v1460 = vunpack.c.h.b16 %v1296
        %v1461 = vunpack.c.l.b16 %v1297
        %v1462 = vpack.c.b16 %v1453, %v1450
        %v1463 = vpack.c.b16 %v1454, %v1451
        %v1464 = vpack.c.b16 %v1455, %v1452
        %v1465 = vpack.c.b16 %v1459, %v1456
        %v1466 = vpack.c.b16 %v1460, %v1457
        %v1467 = vpack.c.b16 %v1461, %v1458
        %v1468 = vunpack.c.l.b16 %v1282
        %v1469 = vunpack.c.h.b16 %v1282
        %v1470 = vunpack.c.l.b16 %v1283
        %v1471 = vunpack.c.l.b16 %v1284
        %v1472 = vunpack.c.h.b16 %v1284
        %v1473 = vunpack.c.l.b16 %v1285
        %v1474 = vunpack.c.l.b16 %v1286
        %v1475 = vunpack.c.h.b16 %v1286
        %v1476 = vunpack.c.l.b16 %v1287
        %v1477 = vunpack.c.l.b16 %v1288
        %v1478 = vunpack.c.h.b16 %v1288
        %v1479 = vunpack.c.l.b16 %v1289
        %v1480 = vpack.c.b16 %v1471, %v1468
        %v1481 = vpack.c.b16 %v1472, %v1469
        %v1482 = vpack.c.b16 %v1473, %v1470
        %v1483 = vpack.c.b16 %v1477, %v1474
        %v1484 = vpack.c.b16 %v1478, %v1475
        %v1485 = vpack.c.b16 %v1479, %v1476
        %1486 = vrot.lane.b32.xlu0 %v1480, 127
        %v1487 = vpop.permute.xlu0 %1486
        %1488 = vrot.lane.b32.xlu0 %v1481, 127
        %v1489 = vpop.permute.xlu0 %1488
        %1490 = vrot.lane.b32.xlu0 %v1482, 127
        %v1491 = vpop.permute.xlu0 %1490
        %1492 = vrot.lane.b32.xlu0 %v1483, 127
        %v1493 = vpop.permute.xlu0 %1492
        %1494 = vrot.lane.b32.xlu0 %v1484, 127
        %v1495 = vpop.permute.xlu0 %1494
        %1496 = vrot.lane.b32.xlu0 %v1485, 127
        %v1497 = vpop.permute.xlu0 %1496
        %v1498 = vsel %vm492, %v1487, %v1489
        %v1499 = vsel %vm492, %v1489, %v1491
        %v1500 = vsel %vm492, %v1493, %v1495
        %v1501 = vsel %vm492, %v1495, %v1497
        %v1510 = vunpack.c.l.b16 %v1298
        %v1511 = vunpack.c.h.b16 %v1298
        %v1512 = vunpack.c.l.b16 %v1299
        %v1513 = vunpack.c.l.b16 %v1300
        %v1514 = vunpack.c.h.b16 %v1300
        %v1515 = vunpack.c.l.b16 %v1301
        %v1516 = vunpack.c.l.b16 %v1302
        %v1517 = vunpack.c.h.b16 %v1302
        %v1518 = vunpack.c.l.b16 %v1303
        %v1519 = vunpack.c.l.b16 %v1304
        %v1520 = vunpack.c.h.b16 %v1304
        %v1521 = vunpack.c.l.b16 %v1305
        %v1522 = vpack.c.b16 %v1513, %v1510
        %v1523 = vpack.c.b16 %v1514, %v1511
        %v1524 = vpack.c.b16 %v1515, %v1512
        %v1525 = vpack.c.b16 %v1519, %v1516
        %v1526 = vpack.c.b16 %v1520, %v1517
        %v1527 = vpack.c.b16 %v1521, %v1518
        %1528 = vrot.lane.b32.xlu0 %v1522, 126
        %v1529 = vpop.permute.xlu0 %1528
        %1530 = vrot.lane.b32.xlu0 %v1523, 126
        %v1531 = vpop.permute.xlu0 %1530
        %1532 = vrot.lane.b32.xlu0 %v1524, 126
        %v1533 = vpop.permute.xlu0 %1532
        %1534 = vrot.lane.b32.xlu0 %v1525, 126
        %v1535 = vpop.permute.xlu0 %1534
        %1536 = vrot.lane.b32.xlu0 %v1526, 126
        %v1537 = vpop.permute.xlu0 %1536
        %1538 = vrot.lane.b32.xlu0 %v1527, 126
        %v1539 = vpop.permute.xlu0 %1538
        %v1540 = vsel %vm731, %v1529, %v1531
        %v1541 = vsel %vm731, %v1531, %v1533
        %v1542 = vsel %vm731, %v1535, %v1537
        %v1543 = vsel %vm731, %v1537, %v1539
        %v1552 = vunpack.c.l.b16 %v1306
        %v1553 = vunpack.c.h.b16 %v1306
        %v1554 = vunpack.c.l.b16 %v1307
        %v1555 = vunpack.c.l.b16 %v1308
        %v1556 = vunpack.c.h.b16 %v1308
        %v1557 = vunpack.c.l.b16 %v1309
        %v1558 = vunpack.c.l.b16 %v1310
        %v1559 = vunpack.c.h.b16 %v1310
        %v1560 = vunpack.c.l.b16 %v1311
        %v1561 = vunpack.c.l.b16 %v1312
        %v1562 = vunpack.c.h.b16 %v1312
        %v1563 = vunpack.c.l.b16 %v1313
        %v1564 = vpack.c.b16 %v1555, %v1552
        %v1565 = vpack.c.b16 %v1556, %v1553
        %v1566 = vpack.c.b16 %v1557, %v1554
        %v1567 = vpack.c.b16 %v1561, %v1558
        %v1568 = vpack.c.b16 %v1562, %v1559
        %v1569 = vpack.c.b16 %v1563, %v1560
        %1570 = vrot.lane.b32.xlu0 %v1564, 112
        %v1571 = vpop.permute.xlu0 %1570
        %1572 = vrot.lane.b32.xlu0 %v1565, 112
        %v1573 = vpop.permute.xlu0 %1572
        %1574 = vrot.lane.b32.xlu0 %v1566, 112
        %v1575 = vpop.permute.xlu0 %1574
        %1576 = vrot.lane.b32.xlu0 %v1567, 112
        %v1577 = vpop.permute.xlu0 %1576
        %1578 = vrot.lane.b32.xlu0 %v1568, 112
        %v1579 = vpop.permute.xlu0 %1578
        %1580 = vrot.lane.b32.xlu0 %v1569, 112
        %v1581 = vpop.permute.xlu0 %1580
        %v1582 = vsel %vm774, %v1571, %v1573
        %v1583 = vsel %vm774, %v1573, %v1575
        %v1584 = vsel %vm774, %v1577, %v1579
        %v1585 = vsel %vm774, %v1579, %v1581
        %1586 = vrot.lane.b32.xlu0 %v1481, 111
        %v1587 = vpop.permute.xlu0 %1586
        %1588 = vrot.lane.b32.xlu0 %v1482, 111
        %v1589 = vpop.permute.xlu0 %1588
        %1590 = vrot.lane.b32.xlu0 %v1484, 111
        %v1591 = vpop.permute.xlu0 %1590
        %1592 = vrot.lane.b32.xlu0 %v1485, 111
        %v1593 = vpop.permute.xlu0 %1592
        %v1594 = vsel %vm456, %v1587, %v1589
        %v1595 = vsel %vm456, %v1591, %v1593
        %v1600 = vunpack.c.l.b16 %v1358
        %v1601 = vunpack.c.h.b16 %v1358
        %v1602 = vunpack.c.l.b16 %v1359
        %v1603 = vunpack.c.h.b16 %v1359
        %v1604 = vunpack.c.l.b16 %v1360
        %v1605 = vunpack.c.h.b16 %v1360
        %v1606 = vunpack.c.l.b16 %v1361
        %v1607 = vunpack.c.h.b16 %v1361
        %v1608 = vpack.c.b16 %v1602, %v1600
        %v1609 = vpack.c.b16 %v1603, %v1601
        %v1610 = vpack.c.b16 %v1606, %v1604
        %v1611 = vpack.c.b16 %v1607, %v1605
        %1612 = vrot.lane.b32.xlu0 %v1608, 111
        %v1613 = vpop.permute.xlu0 %1612
        %1614 = vrot.lane.b32.xlu0 %v1609, 111
        %v1615 = vpop.permute.xlu0 %1614
        %1616 = vrot.lane.b32.xlu0 %v1610, 111
        %v1617 = vpop.permute.xlu0 %1616
        %1618 = vrot.lane.b32.xlu0 %v1611, 111
        %v1619 = vpop.permute.xlu0 %1618
        %v1620 = vsel %vm456, %v1613, %v1615
        %v1621 = vsel %vm456, %v1617, %v1619
        %v1626 = vunpack.c.l.b16 %v1398
        %v1627 = vunpack.c.h.b16 %v1398
        %v1628 = vunpack.c.l.b16 %v1399
        %v1629 = vunpack.c.h.b16 %v1399
        %v1630 = vunpack.c.l.b16 %v1400
        %v1631 = vunpack.c.h.b16 %v1400
        %v1632 = vunpack.c.l.b16 %v1401
        %v1633 = vunpack.c.h.b16 %v1401
        %v1634 = vpack.c.b16 %v1628, %v1626
        %v1635 = vpack.c.b16 %v1629, %v1627
        %v1636 = vpack.c.b16 %v1632, %v1630
        %v1637 = vpack.c.b16 %v1633, %v1631
        %1638 = vrot.lane.b32.xlu0 %v1634, 111
        %v1639 = vpop.permute.xlu0 %1638
        %1640 = vrot.lane.b32.xlu0 %v1635, 111
        %v1641 = vpop.permute.xlu0 %1640
        %1642 = vrot.lane.b32.xlu0 %v1636, 111
        %v1643 = vpop.permute.xlu0 %1642
        %1644 = vrot.lane.b32.xlu0 %v1637, 111
        %v1645 = vpop.permute.xlu0 %1644
        %v1646 = vsel %vm456, %v1639, %v1641
        %v1647 = vsel %vm456, %v1643, %v1645
        %v1648 = vunpack.c.h.b16 %v1283
        %v1649 = vunpack.c.h.b16 %v1285
        %v1650 = vunpack.c.h.b16 %v1287
        %v1651 = vunpack.c.h.b16 %v1289
        %v1652 = vpack.c.b16 %v1649, %v1648
        %v1653 = vpack.c.b16 %v1651, %v1650
        %1654 = vrot.lane.b32.xlu0 %v1481, 95
        %v1655 = vpop.permute.xlu0 %1654
        %1656 = vrot.lane.b32.xlu0 %v1482, 95
        %v1657 = vpop.permute.xlu0 %1656
        %1658 = vrot.lane.b32.xlu0 %v1652, 95
        %v1659 = vpop.permute.xlu0 %1658
        %1660 = vrot.lane.b32.xlu0 %v1484, 95
        %v1661 = vpop.permute.xlu0 %1660
        %1662 = vrot.lane.b32.xlu0 %v1485, 95
        %v1663 = vpop.permute.xlu0 %1662
        %1664 = vrot.lane.b32.xlu0 %v1653, 95
        %v1665 = vpop.permute.xlu0 %1664
        %v1666 = vsel %vm859, %v1655, %v1657
        %v1667 = vsel %vm859, %v1657, %v1659
        %v1668 = vsel %vm859, %v1661, %v1663
        %v1669 = vsel %vm859, %v1663, %v1665
        %v1674 = vunpack.c.l.b16 %v1438
        %v1675 = vunpack.c.h.b16 %v1438
        %v1676 = vunpack.c.l.b16 %v1439
        %v1677 = vunpack.c.h.b16 %v1439
        %v1678 = vunpack.c.l.b16 %v1440
        %v1679 = vunpack.c.h.b16 %v1440
        %v1680 = vunpack.c.l.b16 %v1441
        %v1681 = vunpack.c.h.b16 %v1441
        %v1682 = vpack.c.b16 %v1676, %v1674
        %v1683 = vpack.c.b16 %v1677, %v1675
        %v1684 = vpack.c.b16 %v1680, %v1678
        %v1685 = vpack.c.b16 %v1681, %v1679
        %1686 = vrot.lane.b32.xlu0 %v1682, 111
        %v1687 = vpop.permute.xlu0 %1686
        %1688 = vrot.lane.b32.xlu0 %v1683, 111
        %v1689 = vpop.permute.xlu0 %1688
        %1690 = vrot.lane.b32.xlu0 %v1684, 111
        %v1691 = vpop.permute.xlu0 %1690
        %1692 = vrot.lane.b32.xlu0 %v1685, 111
        %v1693 = vpop.permute.xlu0 %1692
        %v1694 = vsel %vm456, %v1687, %v1689
        %v1695 = vsel %vm456, %v1691, %v1693
        %v1696 = vld [vmem:[#allocation6] sm:$0xff]
        %v1697 = vld [vmem:[#allocation6 + $0x8] sm:$0xf]
        %v1698 = vld [vmem:[#allocation6 + $0xc] sm:$0xff]
        %v1699 = vld [vmem:[#allocation6 + $0x14] sm:$0xf]
        %v1700 = vld [vmem:[#allocation6 + $0x18] sm:$0xff]
        %v1701 = vld [vmem:[#allocation6 + $0x20] sm:$0xf]
        %v1702 = vld [vmem:[#allocation6 + $0x24] sm:$0xff]
        %v1703 = vld [vmem:[#allocation6 + $0x2c] sm:$0xf]
        %v1704 = vld [vmem:[%s4] sm:$0xff]
        %v1705 = vld [vmem:[%s4 + $0x8] sm:$0xff]
        %v1706 = vld [vmem:[%s4 + $0x10] sm:$0xff]
        %v1707 = vld [vmem:[%s4 + $0x18] sm:$0xff]
        %1709 = vset.pattern.permute.xlu0 0
        %1710 = vperm.xlu0 %1709, %v1704
        %v1711 = vpop.permute.xlu0 %1710
        %1714 = vset.pattern.permute.xlu0 0
        %1715 = vperm.xlu0 %1714, %v1705
        %v1716 = vpop.permute.xlu0 %1715
        %1719 = vset.pattern.permute.xlu0 0
        %1720 = vperm.xlu0 %1719, %v1706
        %v1721 = vpop.permute.xlu0 %1720
        %1724 = vset.pattern.permute.xlu0 0
        %1725 = vperm.xlu0 %1724, %v1707
        %v1726 = vpop.permute.xlu0 %1725
        %v1736 = vunpack.c.l.b16 %v1696
        %v1737 = vunpack.c.h.b16 %v1696
        %v1738 = vunpack.c.l.b16 %v1697
        %v1739 = vunpack.c.l.b16 %v1698
        %v1740 = vunpack.c.h.b16 %v1698
        %v1741 = vunpack.c.l.b16 %v1699
        %v1742 = vunpack.c.l.b16 %v1700
        %v1743 = vunpack.c.h.b16 %v1700
        %v1744 = vunpack.c.l.b16 %v1701
        %v1745 = vunpack.c.l.b16 %v1702
        %v1746 = vunpack.c.h.b16 %v1702
        %v1747 = vunpack.c.l.b16 %v1703
        %v1748 = vpack.c.b16 %v1739, %v1736
        %v1749 = vpack.c.b16 %v1740, %v1737
        %v1750 = vpack.c.b16 %v1741, %v1738
        %v1751 = vpack.c.b16 %v1745, %v1742
        %v1752 = vpack.c.b16 %v1746, %v1743
        %v1753 = vpack.c.b16 %v1747, %v1744
        %1758 = vrot.lane.b32.xlu0 %v1462, 17
        %v1759 = vpop.permute.xlu0 %1758
        %1760 = vrot.lane.b32.xlu0 %v1463, 17
        %v1761 = vpop.permute.xlu0 %1760
        %1762 = vrot.lane.b32.xlu0 %v1464, 17
        %v1763 = vpop.permute.xlu0 %1762
        %1764 = vrot.lane.b32.xlu0 %v1465, 17
        %v1765 = vpop.permute.xlu0 %1764
        %1766 = vrot.lane.b32.xlu0 %v1466, 17
        %v1767 = vpop.permute.xlu0 %1766
        %1768 = vrot.lane.b32.xlu0 %v1467, 17
        %v1769 = vpop.permute.xlu0 %1768
        %1770 = vrot.lane.b32.xlu0 %v1498, 17
        %v1771 = vpop.permute.xlu0 %1770
        %1772 = vrot.lane.b32.xlu0 %v1499, 17
        %v1773 = vpop.permute.xlu0 %1772
        %1774 = vrot.lane.b32.xlu0 %v1491, 17
        %v1775 = vpop.permute.xlu0 %1774
        %1776 = vrot.lane.b32.xlu0 %v1500, 17
        %v1777 = vpop.permute.xlu0 %1776
        %1778 = vrot.lane.b32.xlu0 %v1501, 17
        %v1779 = vpop.permute.xlu0 %1778
        %1780 = vrot.lane.b32.xlu0 %v1497, 17
        %v1781 = vpop.permute.xlu0 %1780
        %1782 = vrot.lane.b32.xlu0 %v1540, 17
        %v1783 = vpop.permute.xlu0 %1782
        %1784 = vrot.lane.b32.xlu0 %v1541, 17
        %v1785 = vpop.permute.xlu0 %1784
        %1786 = vrot.lane.b32.xlu0 %v1533, 17
        %v1787 = vpop.permute.xlu0 %1786
        %1788 = vrot.lane.b32.xlu0 %v1542, 17
        %v1789 = vpop.permute.xlu0 %1788
        %1790 = vrot.lane.b32.xlu0 %v1543, 17
        %v1791 = vpop.permute.xlu0 %1790
        %1792 = vrot.lane.b32.xlu0 %v1539, 17
        %v1793 = vpop.permute.xlu0 %1792
        %1794 = vrot.lane.b32.xlu0 %v1582, 17
        %v1795 = vpop.permute.xlu0 %1794
        %1796 = vrot.lane.b32.xlu0 %v1583, 17
        %v1797 = vpop.permute.xlu0 %1796
        %1798 = vrot.lane.b32.xlu0 %v1575, 17
        %v1799 = vpop.permute.xlu0 %1798
        %1800 = vrot.lane.b32.xlu0 %v1584, 17
        %v1801 = vpop.permute.xlu0 %1800
        %1802 = vrot.lane.b32.xlu0 %v1585, 17
        %v1803 = vpop.permute.xlu0 %1802
        %1804 = vrot.lane.b32.xlu0 %v1581, 17
        %v1805 = vpop.permute.xlu0 %1804
        %1806 = vrot.lane.b32.xlu0 %v1587, 17
        %v1807 = vpop.permute.xlu0 %1806
        %1808 = vrot.lane.b32.xlu0 %v1594, 17
        %v1809 = vpop.permute.xlu0 %1808
        %1810 = vrot.lane.b32.xlu0 %v1589, 17
        %v1811 = vpop.permute.xlu0 %1810
        %1812 = vrot.lane.b32.xlu0 %v1591, 17
        %v1813 = vpop.permute.xlu0 %1812
        %1814 = vrot.lane.b32.xlu0 %v1595, 17
        %v1815 = vpop.permute.xlu0 %1814
        %1816 = vrot.lane.b32.xlu0 %v1593, 17
        %v1817 = vpop.permute.xlu0 %1816
        %1818 = vrot.lane.b32.xlu0 %v1613, 17
        %v1819 = vpop.permute.xlu0 %1818
        %1820 = vrot.lane.b32.xlu0 %v1620, 17
        %v1821 = vpop.permute.xlu0 %1820
        %1822 = vrot.lane.b32.xlu0 %v1615, 17
        %v1823 = vpop.permute.xlu0 %1822
        %1824 = vrot.lane.b32.xlu0 %v1617, 17
        %v1825 = vpop.permute.xlu0 %1824
        %1826 = vrot.lane.b32.xlu0 %v1621, 17
        %v1827 = vpop.permute.xlu0 %1826
        %1828 = vrot.lane.b32.xlu0 %v1619, 17
        %v1829 = vpop.permute.xlu0 %1828
        %1830 = vrot.lane.b32.xlu0 %v1639, 17
        %v1831 = vpop.permute.xlu0 %1830
        %1832 = vrot.lane.b32.xlu0 %v1646, 17
        %v1833 = vpop.permute.xlu0 %1832
        %1834 = vrot.lane.b32.xlu0 %v1641, 17
        %v1835 = vpop.permute.xlu0 %1834
        %1836 = vrot.lane.b32.xlu0 %v1643, 17
        %v1837 = vpop.permute.xlu0 %1836
        %1838 = vrot.lane.b32.xlu0 %v1647, 17
        %v1839 = vpop.permute.xlu0 %1838
        %1840 = vrot.lane.b32.xlu0 %v1645, 17
        %v1841 = vpop.permute.xlu0 %1840
        %1842 = vrot.lane.b32.xlu0 %v1655, 17
        %v1843 = vpop.permute.xlu0 %1842
        %1844 = vrot.lane.b32.xlu0 %v1666, 17
        %v1845 = vpop.permute.xlu0 %1844
        %1846 = vrot.lane.b32.xlu0 %v1667, 17
        %v1847 = vpop.permute.xlu0 %1846
        %1848 = vrot.lane.b32.xlu0 %v1661, 17
        %v1849 = vpop.permute.xlu0 %1848
        %1850 = vrot.lane.b32.xlu0 %v1668, 17
        %v1851 = vpop.permute.xlu0 %1850
        %1852 = vrot.lane.b32.xlu0 %v1669, 17
        %v1853 = vpop.permute.xlu0 %1852
        %1854 = vrot.lane.b32.xlu0 %v1687, 17
        %v1855 = vpop.permute.xlu0 %1854
        %1856 = vrot.lane.b32.xlu0 %v1694, 17
        %v1857 = vpop.permute.xlu0 %1856
        %1858 = vrot.lane.b32.xlu0 %v1689, 17
        %v1859 = vpop.permute.xlu0 %1858
        %1860 = vrot.lane.b32.xlu0 %v1691, 17
        %v1861 = vpop.permute.xlu0 %1860
        %1862 = vrot.lane.b32.xlu0 %v1695, 17
        %v1863 = vpop.permute.xlu0 %1862
        %1864 = vrot.lane.b32.xlu0 %v1693, 17
        %v1865 = vpop.permute.xlu0 %1864
        %v1866 = vsel %vm1060, %v1759, %v1761
        %v1867 = vsel %vm1060, %v1761, %v1763
        %v1868 = vsel %vm1060, %v1765, %v1767
        %v1869 = vsel %vm1060, %v1767, %v1769
        %v1870 = vsel %vm1060, %v1771, %v1773
        %v1871 = vsel %vm1060, %v1773, %v1775
        %v1872 = vsel %vm1060, %v1777, %v1779
        %v1873 = vsel %vm1060, %v1779, %v1781
        %v1874 = vsel %vm1060, %v1783, %v1785
        %v1875 = vsel %vm1060, %v1785, %v1787
        %v1876 = vsel %vm1060, %v1789, %v1791
        %v1877 = vsel %vm1060, %v1791, %v1793
        %v1878 = vsel %vm1060, %v1795, %v1797
        %v1879 = vsel %vm1060, %v1797, %v1799
        %v1880 = vsel %vm1060, %v1801, %v1803
        %v1881 = vsel %vm1060, %v1803, %v1805
        %v1882 = vsel %vm1060, %v1807, %v1809
        %v1883 = vsel %vm1060, %v1809, %v1811
        %v1884 = vsel %vm1060, %v1813, %v1815
        %v1885 = vsel %vm1060, %v1815, %v1817
        %v1886 = vsel %vm1060, %v1819, %v1821
        %v1887 = vsel %vm1060, %v1821, %v1823
        %v1888 = vsel %vm1060, %v1825, %v1827
        %v1889 = vsel %vm1060, %v1827, %v1829
        %v1890 = vsel %vm1060, %v1831, %v1833
        %v1891 = vsel %vm1060, %v1833, %v1835
        %v1892 = vsel %vm1060, %v1837, %v1839
        %v1893 = vsel %vm1060, %v1839, %v1841
        %v1894 = vsel %vm1060, %v1843, %v1845
        %v1895 = vsel %vm1060, %v1845, %v1847
        %v1896 = vsel %vm1060, %v1849, %v1851
        %v1897 = vsel %vm1060, %v1851, %v1853
        %v1898 = vsel %vm1060, %v1855, %v1857
        %v1899 = vsel %vm1060, %v1857, %v1859
        %v1900 = vsel %vm1060, %v1861, %v1863
        %v1901 = vsel %vm1060, %v1863, %v1865
        %v1939 = vsel %vm1133, %v1750, 0
        %v1942 = vsel %vm1133, %v1753, 0
        %1944 = vmatprep.subr.bf16.mxu0 %v1881
        %1945 = vmatpush1.bf16.msra.mxu0 %v1880
        %1946 = vmatprep.subr.bf16.mxu0 %v1879
        %1947 = vmatpush1.bf16.msra.mxu0 %v1878
        %1948 = vmatprep.subr.bf16.mxu0 %v1877
        %1949 = vmatpush1.bf16.msra.mxu0 %v1876
        %1950 = vmatprep.subr.bf16.mxu0 %v1875
        %1951 = vmatpush1.bf16.msra.mxu0 %v1874
        %1952 = vmatprep.subr.bf16.mxu0 %v1873
        %1953 = vmatpush1.bf16.msra.mxu0 %v1872
        %1954 = vmatprep.subr.bf16.mxu0 %v1871
        %1955 = vmatpush1.bf16.msra.mxu0 %v1870
        %1956 = vmatprep.subr.bf16.mxu0 %v1869
        %1957 = vmatpush1.bf16.msra.mxu0 %v1868
        %1958 = vmatprep.subr.bf16.mxu0 %v1867
        %1959 = vmatpush1.bf16.msra.mxu0 %v1866
        %1960 = vmatprep.subr.bf16.mxu0 %v1897
        %1961 = vmatpush2.bf16.msra.mxu0 %v1896
        %1962 = vmatprep.subr.bf16.mxu0 %v1895
        %1963 = vmatpush2.bf16.msra.mxu0 %v1894
        %1964 = vmatprep.subr.bf16.mxu0 %v1893
        %1965 = vmatpush2.bf16.msra.mxu0 %v1892
        %1966 = vmatprep.subr.bf16.mxu0 %v1891
        %1967 = vmatpush2.bf16.msra.mxu0 %v1890
        %1968 = vmatprep.subr.bf16.mxu0 %v1889
        %1969 = vmatpush2.bf16.msra.mxu0 %v1888
        %1970 = vmatprep.subr.bf16.mxu0 %v1887
        %1971 = vmatpush2.bf16.msra.mxu0 %v1886
        %1972 = vmatprep.subr.bf16.mxu0 %v1885
        %1973 = vmatpush2.bf16.msra.mxu0 %v1884
        %1974 = vmatprep.subr.bf16.mxu0 %v1883
        %1975 = vmatpush2.bf16.msra.mxu0 %v1882
        %1976 = vmatprep.mubr.bf16.mxu0 %v1749
        %1977 = vmatmul.mubr.bf16.gmra.mxu0 %v1748
        %v1978 = vpop.f32.mrf.mxu0
        %v1979 = vadd.f32 %v1711, %v1978
        %v1980 = vpop.f32.mrf.mxu0
        %v1981 = vadd.f32 %v1711, %v1980
        %v1982 = vpop.f32.mrf.mxu0
        %v1983 = vadd.f32 %v1716, %v1982
        %v1984 = vpop.f32.mrf.mxu0
        %v1985 = vadd.f32 %v1716, %v1984
        %1986 = vmatprep.mubr.bf16.mxu0 %v1752
        %1987 = vmatmul.mubr.bf16.gmra.mxu0 %v1751
        %v1988 = vpop.f32.mrf.mxu0
        %v1989 = vadd.f32 %v1721, %v1988
        %v1990 = vpop.f32.mrf.mxu0
        %v1991 = vadd.f32 %v1721, %v1990
        %v1992 = vpop.f32.mrf.mxu0
        %v1993 = vadd.f32 %v1726, %v1992
        %v1994 = vpop.f32.mrf.mxu0
        %v1995 = vadd.f32 %v1726, %v1994
        %1996 = vdwg.mxu0
        %1997 = vmatprep.subr.bf16.mxu0 0
        %1998 = vmatpush1.bf16.msra.mxu0 0
        %1999 = vmatprep.subr.bf16.mxu0 0
        %2000 = vmatpush1.bf16.msra.mxu0 0
        %2001 = vmatprep.subr.bf16.mxu0 0
        %2002 = vmatpush1.bf16.msra.mxu0 0
        %2003 = vmatprep.subr.bf16.mxu0 0
        %2004 = vmatpush1.bf16.msra.mxu0 0
        %2005 = vmatprep.subr.bf16.mxu0 0
        %2006 = vmatpush1.bf16.msra.mxu0 0
        %2007 = vmatprep.subr.bf16.mxu0 0
        %2008 = vmatpush1.bf16.msra.mxu0 0
        %2009 = vmatprep.subr.bf16.mxu0 %v1901
        %2010 = vmatpush1.bf16.msra.mxu0 %v1900
        %2011 = vmatprep.subr.bf16.mxu0 %v1899
        %2012 = vmatpush1.bf16.msra.mxu0 %v1898
        %2013 = vmatprep.subr.bf16.mxu0 0
        %2014 = vmatpush2.bf16.msra.mxu0 0
        %2015 = vmatprep.subr.bf16.mxu0 0
        %2016 = vmatpush2.bf16.msra.mxu0 0
        %2017 = vmatprep.subr.bf16.mxu0 0
        %2018 = vmatpush2.bf16.msra.mxu0 0
        %2019 = vmatprep.subr.bf16.mxu0 0
        %2020 = vmatpush2.bf16.msra.mxu0 0
        %2021 = vmatprep.subr.bf16.mxu0 0
        %2022 = vmatpush2.bf16.msra.mxu0 0
        %2023 = vmatprep.subr.bf16.mxu0 0
        %2024 = vmatpush2.bf16.msra.mxu0 0
        %2025 = vmatprep.subr.bf16.mxu0 0
        %2026 = vmatpush2.bf16.msra.mxu0 0
        %2027 = vmatprep.subr.bf16.mxu0 0
        %2028 = vmatpush2.bf16.msra.mxu0 0
        %2029 = vmatprep.mubr.bf16.mxu0 0
        %2030 = vmatmul.mubr.bf16.gmra.mxu0 %v1939
        %v2031 = vpop.f32.mrf.mxu0
        %v2032 = vadd.f32 %v1979, %v2031
        %v2033 = vpop.f32.mrf.mxu0
        %v2034 = vadd.f32 %v1981, %v2033
        %v2035 = vpop.f32.mrf.mxu0
        %v2036 = vadd.f32 %v1983, %v2035
        %v2037 = vpop.f32.mrf.mxu0
        %v2038 = vadd.f32 %v1985, %v2037
        %2039 = vmatprep.mubr.bf16.mxu0 0
        %2040 = vmatmul.mubr.bf16.gmra.mxu0 %v1942
        %v2041 = vpop.f32.mrf.mxu0
        %v2042 = vadd.f32 %v1989, %v2041
        %v2043 = vpop.f32.mrf.mxu0
        %v2044 = vadd.f32 %v1991, %v2043
        %v2045 = vpop.f32.mrf.mxu0
        %v2046 = vadd.f32 %v1993, %v2045
        %v2047 = vpop.f32.mrf.mxu0
        %v2048 = vadd.f32 %v1995, %v2047
        %2049 = vdwg.mxu0
        %v2050 = vadd.f32 %v2032, %v2034
        %2051 = vadd.xlane.f32.xlu0 %v2050
        %v2052 = vpop.xlane.xlu0 %2051
        %v2053 = vadd.f32 %v2036, %v2038
        %2054 = vadd.xlane.f32.xlu0 %v2053
        %v2055 = vpop.xlane.xlu0 %2054
        %v2056 = vadd.f32 %v2042, %v2044
        %2057 = vadd.xlane.f32.xlu0 %v2056
        %v2058 = vpop.xlane.xlu0 %2057
        %v2059 = vadd.f32 %v2046, %v2048
        %2060 = vadd.xlane.f32.xlu0 %v2059
        %v2061 = vpop.xlane.xlu0 %2060
        %v2062 = vld [vmem:[%s5] sm:$0xff]
        %v2063 = vld [vmem:[%s5 + $0x8] sm:$0xff]
        %v2064 = vld [vmem:[%s5 + $0x10] sm:$0xff]
        %v2065 = vld [vmem:[%s5 + $0x18] sm:$0xff]
        %v2066 = vmul.f32 %v2052, %v2062
        %v2067 = vmul.f32 %v2055, %v2063
        %v2068 = vmul.f32 %v2058, %v2064
        %v2069 = vmul.f32 %v2061, %v2065
        %vm2070 = vcmask 15360
        %v2071 = vsel %vm2070, %v2066, 0.0
        %v2072 = vsel %vm2070, %v2067, 0.0
        %v2073 = vadd.f32 %v2071, %v2072
        %v2074 = vsel %vm2070, %v2068, 0.0
        %v2075 = vadd.f32 %v2073, %v2074
        %v2076 = vsel %vm2070, %v2069, 0.0
        %v2077 = vadd.f32 %v2075, %v2076
        %v2078 = vrot.slane %v2077, 4
        %v2079 = vadd.f32 %v2077, %v2078
        %v2080 = vrot.slane %v2079, 2
        %v2081 = vadd.f32 %v2079, %v2080
        %v2082 = vrot.slane %v2081, 1
        %v2083 = vadd.f32 %v2081, %v2082
        %v2084 = vld [vmem:[%s6] sm:$0x1]
        %v2085 = vadd.f32 %v2083, %v2084
        %v2086 = vmax.f32 %v2085, 0.0
        %v2087 = vld [vmem:[%s7] sm:$0xff]
        %v2088 = vld [vmem:[%s7 + $0x8] sm:$0xff]
        %v2089 = vld [vmem:[%s7 + $0x10] sm:$0xff]
        %v2090 = vld [vmem:[%s7 + $0x18] sm:$0xff]
        %v2091 = vlaneseq
        %v2092 = vshrl.u32 %v2091, 7
        %v2093 = vsub.s32 0, %v2092
        %v2094 = vrot.slane %v2086, %v2093
        %v2095 = vmul.f32 %v2087, %v2094
        %v2096 = vmul.f32 %v2088, %v2094
        %v2097 = vmul.f32 %v2089, %v2094
        %v2098 = vmul.f32 %v2090, %v2094
        %v2099 = vsel %vm2070, %v2095, 0.0
        %2100 = vadd.xlane.f32.xlu0 %v2099
        %v2101 = vpop.xlane.xlu0 %2100
        %v2102 = vsel %vm2070, %v2096, 0.0
        %2103 = vadd.xlane.f32.xlu0 %v2102
        %v2104 = vpop.xlane.xlu0 %2103
        %v2105 = vsel %vm2070, %v2097, 0.0
        %2106 = vadd.xlane.f32.xlu0 %v2105
        %v2107 = vpop.xlane.xlu0 %2106
        %v2108 = vsel %vm2070, %v2098, 0.0
        %2109 = vadd.xlane.f32.xlu0 %v2108
        %v2110 = vpop.xlane.xlu0 %2109
        %v2111 = vld [vmem:[%s8] sm:$0xff]
        %v2112 = vld [vmem:[%s8 + $0x8] sm:$0xff]
        %v2113 = vld [vmem:[%s8 + $0x10] sm:$0xff]
        %v2114 = vld [vmem:[%s8 + $0x18] sm:$0xff]
        %v2115 = vadd.f32 %v2101, %v2111
        %v2116 = vadd.f32 %v2104, %v2112
        %v2117 = vadd.f32 %v2107, %v2113
        %v2118 = vadd.f32 %v2110, %v2114
        %v2119 = vxor.u32 %v2115, 2147483648
        %v2120 = vxor.u32 %v2116, 2147483648
        %v2121 = vxor.u32 %v2117, 2147483648
        %v2122 = vxor.u32 %v2118, 2147483648
        %v2123 = vmul.f32 %v2119, 1.442695
        %v2124 = vpow.pop %v2123
        %v2125 = vmul.f32 %v2120, 1.442695
        %v2126 = vpow.pop %v2125
        %v2127 = vmul.f32 %v2121, 1.442695
        %v2128 = vpow.pop %v2127
        %v2129 = vmul.f32 %v2122, 1.442695
        %v2130 = vpow.pop %v2129
        %v2131 = vadd.f32 %v2124, 1.0
        %v2132 = vadd.f32 %v2126, 1.0
        %v2133 = vadd.f32 %v2128, 1.0
        %v2134 = vadd.f32 %v2130, 1.0
        %v2135 = vrcp.pop %v2131
        %v2136 = vmul.f32 1.0, %v2135
        %v2137 = vrcp.pop %v2132
        %v2138 = vmul.f32 1.0, %v2137
        %v2139 = vrcp.pop %v2133
        %v2140 = vmul.f32 1.0, %v2139
        %v2141 = vrcp.pop %v2134
        %v2142 = vmul.f32 1.0, %v2141
        %v2143 = vld [vmem:[%s360] sm:$0xff]
        %v2144 = vld [vmem:[%s360 + $0x8] sm:$0xff]
        %v2145 = vld [vmem:[%s360 + $0x10] sm:$0xff]
        %v2146 = vld [vmem:[%s360 + $0x18] sm:$0xff]
        %v2147 = vld [vmem:[%s360 + $0x20] sm:$0xff]
        %v2148 = vld [vmem:[%s360 + $0x28] sm:$0xff]
        %v2149 = vld [vmem:[%s360 + $0x30] sm:$0xff]
        %v2150 = vld [vmem:[%s360 + $0x38] sm:$0xff]
        %2152 = vset.pattern.permute.xlu0 0
        %2153 = vperm.xlu0 %2152, %v2136
        %v2154 = vpop.permute.xlu0 %2153
        %2157 = vset.pattern.permute.xlu0 0
        %2158 = vperm.xlu0 %2157, %v2138
        %v2159 = vpop.permute.xlu0 %2158
        %2162 = vset.pattern.permute.xlu0 0
        %2163 = vperm.xlu0 %2162, %v2140
        %v2164 = vpop.permute.xlu0 %2163
        %2167 = vset.pattern.permute.xlu0 0
        %2168 = vperm.xlu0 %2167, %v2142
        %v2169 = vpop.permute.xlu0 %2168
        %v2171 = vmul.f32 %v2032, %v2154
        %v2172 = vmul.f32 %v2034, %v2154
        %v2173 = vmul.f32 %v2036, %v2159
        %v2174 = vmul.f32 %v2038, %v2159
        %v2175 = vmul.f32 %v2042, %v2164
        %v2176 = vmul.f32 %v2044, %v2164
        %v2177 = vmul.f32 %v2046, %v2169
        %v2178 = vmul.f32 %v2048, %v2169
        %v2179 = vadd.f32 %v2143, %v2171
        %v2180 = vadd.f32 %v2144, %v2172
        %v2181 = vadd.f32 %v2145, %v2173
        %v2182 = vadd.f32 %v2146, %v2174
        %v2183 = vadd.f32 %v2147, %v2175
        %v2184 = vadd.f32 %v2148, %v2176
        %v2185 = vadd.f32 %v2149, %v2177
        %v2186 = vadd.f32 %v2150, %v2178
        %2187 = vst [vmem:[%s355] sm:$0xff] %v2179
        %2188 = vst [vmem:[%s355 + $0x8] sm:$0xff] %v2180
        %2189 = vst [vmem:[%s355 + $0x10] sm:$0xff] %v2181
        %2190 = vst [vmem:[%s355 + $0x18] sm:$0xff] %v2182
        %2191 = vst [vmem:[%s355 + $0x20] sm:$0xff] %v2183
        %2192 = vst [vmem:[%s355 + $0x28] sm:$0xff] %v2184
        %2193 = vst [vmem:[%s355 + $0x30] sm:$0xff] %v2185
        %2194 = vst [vmem:[%s355 + $0x38] sm:$0xff] %v2186
        %s2195 = sand.u32 %s227, 1
        %s2196 = scalar_lea.sflag [#allocation5], %s2195
        %s2197 = sand.u32 %s227, 1
        %s2198 = smul.addr %s2197, 64
        %s2199 = scalar_lea.vmem [#allocation8], %s2198
        // Predicated region
        $region65: #{tpu_custom_call.1} parent=55 // pred_check
          %p2200 = pneg %p237
        $region66: #{tpu_custom_call.1} parent=55 // pred_check_branch
          %2202 = sbr.rel (%p2200) target = $region68
        $region67: #{tpu_custom_call.1} parent=55 // pred_region
          %s2204 = ssub.s32 1024, 1024
          %2205 = vsyncadd %s2196, %s2204
          %s2206 = smul.addr %s25, 8
          %s2207 = smul.addr %s2206, 128
          %s2208 = scalar_lea.hbm %s9, %s2207
          %s2209 = sshll.u32 %s2199, 4
          %s2210 = int_to_ptr.vmem [resolvable:$true] %s2209
          %2215 = dma.vmem_to_hbm [thread:$0]  %s2210, 1024, %s2208, %s2196, 256, 256, 16
        $region68: #{tpu_custom_call.1} parent=55 // pred_fallthru
          _
      $region56: #{tpu_custom_call.1} parent=5 // pred_fallthru
        _
      %p2216 = scmp.le.s32.totalorder 2, %s20
      // Predicated region
      $region69: #{tpu_custom_call.1} parent=5 // pred_check
        %p2217 = pneg %p2216
      $region70: #{tpu_custom_call.1} parent=5 // pred_check_branch
        %2219 = sbr.rel (%p2217) target = $region72
      $region71: #{tpu_custom_call.1} parent=5 // pred_region
        %s2220 = ssub.s32 %s20, 2
        // Predicated region
        $region73: #{tpu_custom_call.1} parent=71 // pred_check
          %p2221 = pneg %p243
        $region74: #{tpu_custom_call.1} parent=71 // pred_check_branch
          %2223 = sbr.rel (%p2221) target = $region76
        $region75: #{tpu_custom_call.1} parent=71 // pred_region
          %s2224 = sand.u32 %s228, 1
          %s2225 = scalar_lea.sflag [#allocation5], %s2224
          %s2226 = sand.u32 %s228, 1
          %s2227 = smul.addr %s2226, 64
          %s2228 = scalar_lea.vmem [#allocation8], %s2227
          %2229 = dma.done %s2225, 1024
        $region76: #{tpu_custom_call.1} parent=71 // pred_fallthru
          _
      $region72: #{tpu_custom_call.1} parent=5 // pred_fallthru
        _
    $region6: #{tpu_custom_call.1} parent=1 // loop_footer
      %s24 = sadd.s32 1, %s20
    $region7: #{tpu_custom_call.1} parent=1 // loop_footer_branch
      %19 = sbr.rel target = $region3
    $region8: #{tpu_custom_call.1} parent=1 // loop_exit
      _
    %2230 = vsyncpa [#allocation4], 1
    %s2231 = scalar_lea.sflag [#allocation4], 1
    %2232 = vsyncpa %s2231, 1
    %2233 = vsyncpa [#allocation7], 1
    %2234 = vsyncpa [#allocation5], 1
    %s2235 = scalar_lea.sflag [#allocation5], 1
    %2236 = vsyncpa %s2235, 1

</llo_original>
